<compile_context>
chip_gen: v6e
topology: v6e:2x2x1
jax: 0.10.0
libtpu: 0.0.40
codegen_flags: <defaults>
</compile_context>

<pallas_src>
import math

import jax
import jax.numpy as jnp
from jax.experimental import pallas as pl
from jax.experimental.pallas import tpu as pltpu

B, C, H, W = 2, 4, 16, 16
NK = 8
HW = H * W


# ------------------------------- fused kernel --------------------------------


def _transform_kernel(par_ref,            # SMEM (B, 8) scalar-prefetch params
                      frame_flat_ref,     # VMEM (B*C, HW)
                      frame_chw_ref,      # VMEM (B*C*H, W)
                      wblk_ref,           # VMEM (2*B*NK, 2*B*C) block-diag weights
                      gf_ref,             # VMEM (HW, 8)  [gx, gy, f0..f3, 0, 0]
                      gridt_ref,          # VMEM (2, HW)  rows = (gx, gy)
                      out_ref):           # SMEM (2,) -> [loss_ecv, loss_ecj]
    # ---- batch-invariant pieces (single grid step -> computed once) ---------
    gx = gridt_ref[0:1, :]                                       # (1, HW)
    gy = gridt_ref[1:2, :]
    qx = jax.lax.broadcasted_iota(jnp.int32, (W, HW), 0).astype(jnp.float32)
    qy = jax.lax.broadcasted_iota(jnp.int32, (H, HW), 0).astype(jnp.float32)

    # ---- affine warp of the sampling grid + separable bilinear grid_sample --
    warped = []
    for b in range(B):
        # Per-batch transform params as SMEM scalars:
        # [scale, m00, m01, m10, m11, shift_x, shift_y, 0] with M = R @ S.
        scale = par_ref[b, 0]
        m00 = par_ref[b, 1]
        m01 = par_ref[b, 2]
        m10 = par_ref[b, 3]
        m11 = par_ref[b, 4]
        sx = par_ref[b, 5]
        sy = par_ref[b, 6]

        wx = scale * (gx * m00 + gy * m10) + sx                  # (1, HW)
        wy = scale * (gx * m01 + gy * m11) + sy
        ix = (wx + 1.0) * (0.5 * (W - 1))                        # pixel x
        iy = (wy + 1.0) * (0.5 * (H - 1))                        # pixel y

        tx = jnp.maximum(0.0, 1.0 - jnp.abs(ix - qx))            # (W, HW)
        ty = jnp.maximum(0.0, 1.0 - jnp.abs(iy - qy))            # (H, HW)

        # contract over source columns (one small matmul) ...
        tmp = jnp.dot(frame_chw_ref[b * C * H:(b + 1) * C * H, :], tx,
                      preferred_element_type=jnp.float32)        # (C*H, HW)
        # ... then over source rows: tile-aligned reshape + one wide reduce.
        warped.append(jnp.sum(tmp.reshape(C, H, HW) * ty[None, :, :],
                              axis=1))                           # (C, HW)

    # ---- ONE fused kp_detector pass over {orig, warped} x batches -----------
    x_all = jnp.concatenate([frame_flat_ref[...]] + warped, axis=0)  # (2B*C, HW)
    logits = jnp.dot(wblk_ref[...], x_all,
                     preferred_element_type=jnp.float32)             # (2B*NK, HW)
    m = jnp.max(logits, axis=-1, keepdims=True)
    e = jnp.exp(logits - m)
    heat = e * pl.reciprocal(jnp.sum(e, axis=-1, keepdims=True), approx=True)
    # single lane-dense matmul -> [kp_x, kp_y, mom0..mom3, 0, 0] per heatmap
    km = jnp.dot(heat, gf_ref[...],
                 preferred_element_type=jnp.float32)                 # (2B*NK, 8)

    # ---- loss reductions (accumulated over batches, finished in-kernel) -----
    s_ecv = 0.0
    s_ecj = 0.0
    for b in range(B):
        scale = par_ref[b, 0]
        m00 = par_ref[b, 1]
        m01 = par_ref[b, 2]
        m10 = par_ref[b, 3]
        m11 = par_ref[b, 4]
        sx = par_ref[b, 5]
        sy = par_ref[b, 6]

        km1 = km[b * NK:(b + 1) * NK, :]            # detector on original frame
        km2 = km[(B + b) * NK:(B + b + 1) * NK, :]  # detector on warped frame

        # equivariance-value loss
        k1x = km1[:, 0:1]; k1y = km1[:, 1:2]
        k2x = km2[:, 0:1]; k2y = km2[:, 1:2]
        ex = scale * (k2x * m00 + k2y * m10) + sx
        ey = scale * (k2x * m01 + k2y * m11) + sy
        s_ecv = s_ecv + jnp.sum(jnp.abs(k1x - ex) + jnp.abs(k1y - ey))

        # equivariance-jacobian loss
        # jacobian of warp_kp wrt kp (constant per batch): J = scale * (R@S)^T
        j00 = scale * m00; j01 = scale * m10
        j10 = scale * m01; j11 = scale * m11

        # keypoint jacobians: I + 0.1 * moments (identity folded in as scalars)
        a = 1.0 + 0.1 * km1[:, 2:3]; b_ = 0.1 * km1[:, 3:4]
        c_ = 0.1 * km1[:, 4:5];      d = 1.0 + 0.1 * km1[:, 5:6]
        e_ = 1.0 + 0.1 * km2[:, 2:3]; f_ = 0.1 * km2[:, 3:4]
        g_ = 0.1 * km2[:, 4:5];       h_ = 1.0 + 0.1 * km2[:, 5:6]

        inv_det = 1.0 / (a * d - b_ * c_)           # analytic 2x2 inverse
        i00 = d * inv_det; i01 = -b_ * inv_det
        i10 = -c_ * inv_det; i11 = a * inv_det

        t00 = j00 * e_ + j01 * g_; t01 = j00 * f_ + j01 * h_
        t10 = j10 * e_ + j11 * g_; t11 = j10 * f_ + j11 * h_

        e00 = i00 * t00 + i01 * t10; e01 = i00 * t01 + i01 * t11
        e10 = i10 * t00 + i11 * t10; e11 = i10 * t01 + i11 * t11
        s_ecj = s_ecj + jnp.sum(jnp.abs(e00 - 1.0) + jnp.abs(e01) +
                                jnp.abs(e10) + jnp.abs(e11 - 1.0))

    out_ref[0] = s_ecv / (B * NK * 2)
    out_ref[1] = s_ecj / (B * NK * 4)


# ------------------------------- wrapper --------------------------------------


def transform_forward(frame, w_det, grid_flat, grid_t, feats, params):
    """frame: (B,C,H,W); params: (B,8) = [scale, M00,M01,M10,M11, sx, sy, 0]."""
    frame_flat = frame.reshape(B * C, HW)
    frame_chw = frame.reshape(B * C * H, W)
    # lane-dense RHS for the soft-argmax + moment matmul: [gx, gy, f0..f3, 0, 0]
    grid_feats = jnp.concatenate(
        [grid_flat, feats, jnp.zeros((HW, 2), jnp.float32)], axis=-1)
    # block-diagonal detector weights so originals+warped of both batches go
    # through ONE logits matmul.
    w_blk = jnp.kron(jnp.eye(2 * B, dtype=jnp.float32), w_det)      # (2B*NK, 2B*C)

    out = pl.pallas_call(
        _transform_kernel,
        out_shape=jax.ShapeDtypeStruct((2,), jnp.float32),
        grid_spec=pltpu.PrefetchScalarGridSpec(
            num_scalar_prefetch=1,                       # params -> SMEM scalars
            grid=(1,),                                   # batch collapsed in-kernel
            in_specs=[
                pl.BlockSpec((B * C, HW), lambda i, par: (0, 0)),
                pl.BlockSpec((B * C * H, W), lambda i, par: (0, 0)),
                pl.BlockSpec((2 * B * NK, 2 * B * C), lambda i, par: (0, 0)),
                pl.BlockSpec((HW, 8), lambda i, par: (0, 0)),
                pl.BlockSpec((2, HW), lambda i, par: (0, 0)),
            ],
            out_specs=pl.BlockSpec(memory_space=pltpu.MemorySpace.SMEM),
        ),
        compiler_params=pltpu.CompilerParams(
            dimension_semantics=("arbitrary",)),
    )(params, frame_flat, frame_chw, w_blk, grid_feats, grid_t)

    return {"ecv": out[0], "ecj": out[1]}


# ----------------------------- pure-JAX reference -----------------------------


def _ref_kp_detector(frame_flat, w_det, grid_flat, feats):
    logits = jnp.einsum("kc,bcp->bkp", w_det, frame_flat)
    heat = jax.nn.softmax(logits, axis=-1)
    kp = jnp.einsum("bkp,pd->bkd", heat, grid_flat)
    jac = (jnp.array([1.0, 0.0, 0.0, 1.0])[None, None] +
           0.1 * jnp.einsum("bkp,pf->bkf", heat, feats))
    return kp, jac


def _ref_warp_kp(kp, scale, M, shift):
    kpt = scale[:, None, :] * kp
    kpt = jnp.einsum("bnd,bde->bne", kpt, M)
    return kpt + shift[:, None, :]


def _ref_grid_sample(frame, warped_grid):
    ix = (warped_grid[..., 0] + 1.0) * 0.5 * (W - 1)      # (B, HW)
    iy = (warped_grid[..., 1] + 1.0) * 0.5 * (H - 1)
    qx = (jnp.arange(HW) % W).astype(jnp.float32)
    qy = (jnp.arange(HW) // W).astype(jnp.float32)
    wt = (jnp.maximum(0.0, 1.0 - jnp.abs(ix[:, None, :] - qx[None, :, None])) *
          jnp.maximum(0.0, 1.0 - jnp.abs(iy[:, None, :] - qy[None, :, None])))
    return jnp.einsum("bcq,bqp->bcp", frame.reshape(B, C, HW), wt)


def _ref_forward(frame, w_det, grid_flat, scale, M, shift, feats):
    frame_flat = frame.reshape(B, C, HW)
    kp1, j1 = _ref_kp_detector(frame_flat, w_det, grid_flat, feats)
    warped_grid = _ref_warp_kp(jnp.broadcast_to(grid_flat[None], (B, HW, 2)),
                               scale, M, shift)
    ftf = _ref_grid_sample(frame, warped_grid)
    kp2, j2 = _ref_kp_detector(ftf, w_det, grid_flat, feats)
    ecv = _ref_warp_kp(kp2, scale, M, shift)
    loss_ecv = jnp.mean(jnp.abs(kp1 - ecv))
    J1 = j1.reshape(B, NK, 2, 2)
    J2 = j2.reshape(B, NK, 2, 2)
    Jwarp = (scale[:, :, None] * jnp.swapaxes(M, 1, 2))[:, None]   # (B,1,2,2)
    ecj = jnp.linalg.inv(J1) @ (Jwarp @ J2)
    loss_ecj = jnp.mean(jnp.abs(ecj - jnp.eye(2)))
    return {"ecv": loss_ecv, "ecj": loss_ecj}


# --------------------------------- main ---------------------------------------

if __name__ == "__main__":
    key = jax.random.PRNGKey(0)
    ks = jax.random.split(key, 8)

    # Transform parameters (deterministic, mirrors the PyTorch __init__ math).
    angle_rad = 30.0 / 180.0 * math.pi
    scale = 0.35 * (jax.random.uniform(ks[0], (B, 1)) - 0.5) + 1.0
    theta = angle_rad * (jax.random.uniform(ks[1], (B, 1)) - 0.5)
    ct = jnp.cos(theta)[:, :, None]
    st = jnp.sin(theta)[:, :, None]
    R = jnp.concatenate([jnp.concatenate([ct, st], axis=-1),
                         jnp.concatenate([-st, ct], axis=-1)], axis=-2)   # (B,2,2)
    hsh = jnp.tan(angle_rad * (jax.random.uniform(ks[2], (B, 1)) - 0.5))[:, :, None]
    vsh = jnp.tan(angle_rad * (jax.random.uniform(ks[3], (B, 1)) - 0.5))[:, :, None]
    one = jnp.ones((B, 1, 1))
    S = jnp.concatenate([jnp.concatenate([one, vsh], axis=-1),
                         jnp.concatenate([hsh, one], axis=-1)], axis=-2)  # (B,2,2)
    shift = 0.3 * jax.random.uniform(ks[4], (B, 2))
    M = jnp.einsum("bij,bjk->bik", R, S)                                  # R @ S
    params = jnp.concatenate(
        [scale, M.reshape(B, 4), shift, jnp.zeros((B, 1))], axis=1
    ).astype(jnp.float32)                                                 # (B, 8)

    # Synthetic kp_detector weights.
    w_det = (0.5 * jax.random.normal(ks[5], (NK, C))).astype(jnp.float32)

    # Meshgrid in [-1, 1] (x fastest along width), flattened.
    xs = jnp.linspace(-1.0, 1.0, W)
    ys = jnp.linspace(-1.0, 1.0, H)
    xx, yy = jnp.meshgrid(xs, ys)                                         # (H, W)
    grid_flat = jnp.stack([xx, yy], axis=-1).reshape(HW, 2).astype(jnp.float32)
    grid_t = grid_flat.T.astype(jnp.float32)                              # (2, HW)
    feats = jnp.stack([grid_flat[:, 0] * grid_flat[:, 1],
                       grid_flat[:, 0],
                       grid_flat[:, 1],
                       grid_flat[:, 0] ** 2 - grid_flat[:, 1] ** 2],
                      axis=-1).astype(jnp.float32)                        # (HW, 4)

    frame = jax.random.uniform(ks[6], (B, C, H, W), dtype=jnp.float32)

    loss = transform_forward(frame, w_det, grid_flat, grid_t, feats, params)
    loss = jax.tree_util.tree_map(jax.block_until_ready, loss)

    ref = _ref_forward(frame, w_det, grid_flat, scale, M, shift, feats)
    # Tolerances account for pl.reciprocal(approx=True) in the softmax denom.
    assert jnp.allclose(loss["ecv"], ref["ecv"], rtol=5e-3, atol=5e-4), (loss, ref)
    assert jnp.allclose(loss["ecj"], ref["ecj"], rtol=5e-3, atol=5e-4), (loss, ref)

    print("KERNEL_OK")
</pallas_src>

<mosaic_0001>
module attributes {stable_mosaic.version = 11 : i64} {
  func.func @_transform_kernel(%arg0: i32, %arg1: memref<2x8xf32, #tpu.memory_space<smem>>, %arg2: memref<8x256xf32, #tpu.memory_space<vmem>>, %arg3: memref<128x16xf32, #tpu.memory_space<vmem>>, %arg4: memref<32x16xf32, #tpu.memory_space<vmem>>, %arg5: memref<256x8xf32, #tpu.memory_space<vmem>>, %arg6: memref<2x256xf32, #tpu.memory_space<vmem>>, %arg7: memref<2xf32, #tpu.memory_space<smem>>) attributes {dimension_semantics = [#tpu.dimension_semantics<arbitrary>], iteration_bounds = array<i64: 1>, scalar_prefetch = 1 : i64, scratch_operands = 0 : i64, tpu.core_type = #tpu.core_type<tc>, window_params = [{pipeline_mode = #tpu.pipeline_mode<synchronous>, transform_indices = @transform_0, window_bounds = array<i64: 8, 256>}, {pipeline_mode = #tpu.pipeline_mode<synchronous>, transform_indices = @transform_1, window_bounds = array<i64: 128, 16>}, {pipeline_mode = #tpu.pipeline_mode<synchronous>, transform_indices = @transform_2, window_bounds = array<i64: 32, 16>}, {pipeline_mode = #tpu.pipeline_mode<synchronous>, transform_indices = @transform_3, window_bounds = array<i64: 256, 8>}, {pipeline_mode = #tpu.pipeline_mode<synchronous>, transform_indices = @transform_4, window_bounds = array<i64: 2, 256>}, {transform_indices = @transform_5, window_bounds = array<i64: 2>}]} {
    %c0 = arith.constant 0 : index
    %c0_0 = arith.constant 0 : index
    %0 = vector.load %arg6[%c0, %c0_0] : memref<2x256xf32, #tpu.memory_space<vmem>>, vector<1x256xf32>
    %c1 = arith.constant 1 : index
    %c0_1 = arith.constant 0 : index
    %1 = vector.load %arg6[%c1, %c0_1] : memref<2x256xf32, #tpu.memory_space<vmem>>, vector<1x256xf32>
    %2 = tpu.iota {dimensions = array<i32: 0>} : vector<16x256xi32>
    %3 = arith.sitofp %2 : vector<16x256xi32> to vector<16x256xf32>
    %4 = tpu.iota {dimensions = array<i32: 0>} : vector<16x256xi32>
    %5 = arith.sitofp %4 : vector<16x256xi32> to vector<16x256xf32>
    %c0_2 = arith.constant 0 : index
    %c0_3 = arith.constant 0 : index
    %6 = memref.load %arg1[%c0_2, %c0_3] : memref<2x8xf32, #tpu.memory_space<smem>>
    %c0_4 = arith.constant 0 : index
    %c1_5 = arith.constant 1 : index
    %7 = memref.load %arg1[%c0_4, %c1_5] : memref<2x8xf32, #tpu.memory_space<smem>>
    %c0_6 = arith.constant 0 : index
    %c2 = arith.constant 2 : index
    %8 = memref.load %arg1[%c0_6, %c2] : memref<2x8xf32, #tpu.memory_space<smem>>
    %c0_7 = arith.constant 0 : index
    %c3 = arith.constant 3 : index
    %9 = memref.load %arg1[%c0_7, %c3] : memref<2x8xf32, #tpu.memory_space<smem>>
    %c0_8 = arith.constant 0 : index
    %c4 = arith.constant 4 : index
    %10 = memref.load %arg1[%c0_8, %c4] : memref<2x8xf32, #tpu.memory_space<smem>>
    %c0_9 = arith.constant 0 : index
    %c5 = arith.constant 5 : index
    %11 = memref.load %arg1[%c0_9, %c5] : memref<2x8xf32, #tpu.memory_space<smem>>
    %c0_10 = arith.constant 0 : index
    %c6 = arith.constant 6 : index
    %12 = memref.load %arg1[%c0_10, %c6] : memref<2x8xf32, #tpu.memory_space<smem>>
    %13 = vector.broadcast %7 : f32 to vector<1x256xf32>
    %14 = arith.mulf %0, %13 : vector<1x256xf32>
    %15 = vector.broadcast %9 : f32 to vector<1x256xf32>
    %16 = arith.mulf %1, %15 : vector<1x256xf32>
    %17 = arith.addf %14, %16 : vector<1x256xf32>
    %18 = vector.broadcast %6 : f32 to vector<1x256xf32>
    %19 = arith.mulf %18, %17 : vector<1x256xf32>
    %20 = vector.broadcast %11 : f32 to vector<1x256xf32>
    %21 = arith.addf %19, %20 : vector<1x256xf32>
    %22 = vector.broadcast %8 : f32 to vector<1x256xf32>
    %23 = arith.mulf %0, %22 : vector<1x256xf32>
    %24 = vector.broadcast %10 : f32 to vector<1x256xf32>
    %25 = arith.mulf %1, %24 : vector<1x256xf32>
    %26 = arith.addf %23, %25 : vector<1x256xf32>
    %27 = vector.broadcast %6 : f32 to vector<1x256xf32>
    %28 = arith.mulf %27, %26 : vector<1x256xf32>
    %29 = vector.broadcast %12 : f32 to vector<1x256xf32>
    %30 = arith.addf %28, %29 : vector<1x256xf32>
    %cst = arith.constant 1.000000e+00 : f32
    %31 = vector.broadcast %cst : f32 to vector<1x256xf32>
    %32 = arith.addf %21, %31 : vector<1x256xf32>
    %cst_11 = arith.constant 7.500000e+00 : f32
    %33 = vector.broadcast %cst_11 : f32 to vector<1x256xf32>
    %34 = arith.mulf %32, %33 : vector<1x256xf32>
    %cst_12 = arith.constant 1.000000e+00 : f32
    %35 = vector.broadcast %cst_12 : f32 to vector<1x256xf32>
    %36 = arith.addf %30, %35 : vector<1x256xf32>
    %cst_13 = arith.constant 7.500000e+00 : f32
    %37 = vector.broadcast %cst_13 : f32 to vector<1x256xf32>
    %38 = arith.mulf %36, %37 : vector<1x256xf32>
    %39 = vector.broadcast %34 : vector<1x256xf32> to vector<16x256xf32>
    %40 = arith.subf %39, %3 : vector<16x256xf32>
    %41 = math.absf %40 : vector<16x256xf32>
    %cst_14 = arith.constant 1.000000e+00 : f32
    %42 = vector.broadcast %cst_14 : f32 to vector<16x256xf32>
    %43 = arith.subf %42, %41 : vector<16x256xf32>
    %cst_15 = arith.constant 0.000000e+00 : f32
    %44 = vector.broadcast %cst_15 : f32 to vector<16x256xf32>
    %45 = arith.maximumf %44, %43 : vector<16x256xf32>
    %46 = vector.broadcast %38 : vector<1x256xf32> to vector<16x256xf32>
    %47 = arith.subf %46, %5 : vector<16x256xf32>
    %48 = math.absf %47 : vector<16x256xf32>
    %cst_16 = arith.constant 1.000000e+00 : f32
    %49 = vector.broadcast %cst_16 : f32 to vector<16x256xf32>
    %50 = arith.subf %49, %48 : vector<16x256xf32>
    %cst_17 = arith.constant 0.000000e+00 : f32
    %51 = vector.broadcast %cst_17 : f32 to vector<16x256xf32>
    %52 = arith.maximumf %51, %50 : vector<16x256xf32>
    %c0_18 = arith.constant 0 : index
    %c0_19 = arith.constant 0 : index
    %53 = vector.load %arg3[%c0_18, %c0_19] : memref<128x16xf32, #tpu.memory_space<vmem>>, vector<64x16xf32>
    %cst_20 = arith.constant dense<0.000000e+00> : vector<64x256xf32>
    %54 = tpu.matmul %53, %45, %cst_20 {dimension_numbers = #tpu.dot_dimension_numbers<[1], [0], [0], [1], [0, 0, 1, 1], [], []>} : vector<64x16xf32>, vector<16x256xf32>, vector<64x256xf32> -> vector<64x256xf32>
    %55 = vector.shape_cast %54 : vector<64x256xf32> to vector<4x16x256xf32>
    %56 = vector.shape_cast %52 : vector<16x256xf32> to vector<1x16x256xf32>
    %57 = vector.broadcast %56 : vector<1x16x256xf32> to vector<4x16x256xf32>
    %58 = arith.mulf %55, %57 : vector<4x16x256xf32>
    %cst_21 = arith.constant dense<0.000000e+00> : vector<4x256xf32>
    %59 = vector.multi_reduction <add>, %58, %cst_21 [1] : vector<4x16x256xf32> to vector<4x256xf32>
    %c1_22 = arith.constant 1 : index
    %c0_23 = arith.constant 0 : index
    %60 = memref.load %arg1[%c1_22, %c0_23] : memref<2x8xf32, #tpu.memory_space<smem>>
    %c1_24 = arith.constant 1 : index
    %c1_25 = arith.constant 1 : index
    %61 = memref.load %arg1[%c1_24, %c1_25] : memref<2x8xf32, #tpu.memory_space<smem>>
    %c1_26 = arith.constant 1 : index
    %c2_27 = arith.constant 2 : index
    %62 = memref.load %arg1[%c1_26, %c2_27] : memref<2x8xf32, #tpu.memory_space<smem>>
    %c1_28 = arith.constant 1 : index
    %c3_29 = arith.constant 3 : index
    %63 = memref.load %arg1[%c1_28, %c3_29] : memref<2x8xf32, #tpu.memory_space<smem>>
    %c1_30 = arith.constant 1 : index
    %c4_31 = arith.constant 4 : index
    %64 = memref.load %arg1[%c1_30, %c4_31] : memref<2x8xf32, #tpu.memory_space<smem>>
    %c1_32 = arith.constant 1 : index
    %c5_33 = arith.constant 5 : index
    %65 = memref.load %arg1[%c1_32, %c5_33] : memref<2x8xf32, #tpu.memory_space<smem>>
    %c1_34 = arith.constant 1 : index
    %c6_35 = arith.constant 6 : index
    %66 = memref.load %arg1[%c1_34, %c6_35] : memref<2x8xf32, #tpu.memory_space<smem>>
    %67 = vector.broadcast %61 : f32 to vector<1x256xf32>
    %68 = arith.mulf %0, %67 : vector<1x256xf32>
    %69 = vector.broadcast %63 : f32 to vector<1x256xf32>
    %70 = arith.mulf %1, %69 : vector<1x256xf32>
    %71 = arith.addf %68, %70 : vector<1x256xf32>
    %72 = vector.broadcast %60 : f32 to vector<1x256xf32>
    %73 = arith.mulf %72, %71 : vector<1x256xf32>
    %74 = vector.broadcast %65 : f32 to vector<1x256xf32>
    %75 = arith.addf %73, %74 : vector<1x256xf32>
    %76 = vector.broadcast %62 : f32 to vector<1x256xf32>
    %77 = arith.mulf %0, %76 : vector<1x256xf32>
    %78 = vector.broadcast %64 : f32 to vector<1x256xf32>
    %79 = arith.mulf %1, %78 : vector<1x256xf32>
    %80 = arith.addf %77, %79 : vector<1x256xf32>
    %81 = vector.broadcast %60 : f32 to vector<1x256xf32>
    %82 = arith.mulf %81, %80 : vector<1x256xf32>
    %83 = vector.broadcast %66 : f32 to vector<1x256xf32>
    %84 = arith.addf %82, %83 : vector<1x256xf32>
    %cst_36 = arith.constant 1.000000e+00 : f32
    %85 = vector.broadcast %cst_36 : f32 to vector<1x256xf32>
    %86 = arith.addf %75, %85 : vector<1x256xf32>
    %cst_37 = arith.constant 7.500000e+00 : f32
    %87 = vector.broadcast %cst_37 : f32 to vector<1x256xf32>
    %88 = arith.mulf %86, %87 : vector<1x256xf32>
    %cst_38 = arith.constant 1.000000e+00 : f32
    %89 = vector.broadcast %cst_38 : f32 to vector<1x256xf32>
    %90 = arith.addf %84, %89 : vector<1x256xf32>
    %cst_39 = arith.constant 7.500000e+00 : f32
    %91 = vector.broadcast %cst_39 : f32 to vector<1x256xf32>
    %92 = arith.mulf %90, %91 : vector<1x256xf32>
    %93 = vector.broadcast %88 : vector<1x256xf32> to vector<16x256xf32>
    %94 = arith.subf %93, %3 : vector<16x256xf32>
    %95 = math.absf %94 : vector<16x256xf32>
    %cst_40 = arith.constant 1.000000e+00 : f32
    %96 = vector.broadcast %cst_40 : f32 to vector<16x256xf32>
    %97 = arith.subf %96, %95 : vector<16x256xf32>
    %cst_41 = arith.constant 0.000000e+00 : f32
    %98 = vector.broadcast %cst_41 : f32 to vector<16x256xf32>
    %99 = arith.maximumf %98, %97 : vector<16x256xf32>
    %100 = vector.broadcast %92 : vector<1x256xf32> to vector<16x256xf32>
    %101 = arith.subf %100, %5 : vector<16x256xf32>
    %102 = math.absf %101 : vector<16x256xf32>
    %cst_42 = arith.constant 1.000000e+00 : f32
    %103 = vector.broadcast %cst_42 : f32 to vector<16x256xf32>
    %104 = arith.subf %103, %102 : vector<16x256xf32>
    %cst_43 = arith.constant 0.000000e+00 : f32
    %105 = vector.broadcast %cst_43 : f32 to vector<16x256xf32>
    %106 = arith.maximumf %105, %104 : vector<16x256xf32>
    %c64 = arith.constant 64 : index
    %c0_44 = arith.constant 0 : index
    %107 = vector.load %arg3[%c64, %c0_44] : memref<128x16xf32, #tpu.memory_space<vmem>>, vector<64x16xf32>
    %cst_45 = arith.constant dense<0.000000e+00> : vector<64x256xf32>
    %108 = tpu.matmul %107, %99, %cst_45 {dimension_numbers = #tpu.dot_dimension_numbers<[1], [0], [0], [1], [0, 0, 1, 1], [], []>} : vector<64x16xf32>, vector<16x256xf32>, vector<64x256xf32> -> vector<64x256xf32>
    %109 = vector.shape_cast %108 : vector<64x256xf32> to vector<4x16x256xf32>
    %110 = vector.shape_cast %106 : vector<16x256xf32> to vector<1x16x256xf32>
    %111 = vector.broadcast %110 : vector<1x16x256xf32> to vector<4x16x256xf32>
    %112 = arith.mulf %109, %111 : vector<4x16x256xf32>
    %cst_46 = arith.constant dense<0.000000e+00> : vector<4x256xf32>
    %113 = vector.multi_reduction <add>, %112, %cst_46 [1] : vector<4x16x256xf32> to vector<4x256xf32>
    %c0_47 = arith.constant 0 : index
    %c0_48 = arith.constant 0 : index
    %114 = vector.load %arg2[%c0_47, %c0_48] : memref<8x256xf32, #tpu.memory_space<vmem>>, vector<8x256xf32>
    %115 = tpu.concatenate %114, %59, %113 in 0 : vector<8x256xf32>, vector<4x256xf32>, vector<4x256xf32> -> vector<16x256xf32>
    %c0_49 = arith.constant 0 : index
    %c0_50 = arith.constant 0 : index
    %116 = vector.load %arg4[%c0_49, %c0_50] : memref<32x16xf32, #tpu.memory_space<vmem>>, vector<32x16xf32>
    %cst_51 = arith.constant dense<0.000000e+00> : vector<32x256xf32>
    %117 = tpu.matmul %116, %115, %cst_51 {dimension_numbers = #tpu.dot_dimension_numbers<[1], [0], [0], [1], [0, 0, 1, 1], [], []>} : vector<32x16xf32>, vector<16x256xf32>, vector<32x256xf32> -> vector<32x256xf32>
    %cst_52 = arith.constant dense<0xFF800000> : vector<32xf32>
    %118 = vector.multi_reduction <maximumf>, %117, %cst_52 [1] : vector<32x256xf32> to vector<32xf32>
    %119 = vector.shape_cast %118 : vector<32xf32> to vector<32x1xf32>
    %120 = vector.broadcast %119 : vector<32x1xf32> to vector<32x256xf32>
    %121 = arith.subf %117, %120 : vector<32x256xf32>
    %122 = math.exp %121 : vector<32x256xf32>
    %cst_53 = arith.constant dense<0.000000e+00> : vector<32xf32>
    %123 = vector.multi_reduction <add>, %122, %cst_53 [1] : vector<32x256xf32> to vector<32xf32>
    %124 = vector.shape_cast %123 : vector<32xf32> to vector<32x1xf32>
    %125 = tpu.reciprocal %124 {approx = true} : vector<32x1xf32> -> vector<32x1xf32>
    %126 = vector.broadcast %125 : vector<32x1xf32> to vector<32x256xf32>
    %127 = arith.mulf %122, %126 : vector<32x256xf32>
    %c0_54 = arith.constant 0 : index
    %c0_55 = arith.constant 0 : index
    %128 = vector.load %arg5[%c0_54, %c0_55] : memref<256x8xf32, #tpu.memory_space<vmem>>, vector<256x8xf32>
    %cst_56 = arith.constant dense<0.000000e+00> : vector<32x8xf32>
    %129 = tpu.matmul %127, %128, %cst_56 {dimension_numbers = #tpu.dot_dimension_numbers<[1], [0], [0], [1], [0, 0, 1, 1], [], []>} : vector<32x256xf32>, vector<256x8xf32>, vector<32x8xf32> -> vector<32x8xf32>
    %c0_57 = arith.constant 0 : index
    %c0_58 = arith.constant 0 : index
    %130 = memref.load %arg1[%c0_57, %c0_58] : memref<2x8xf32, #tpu.memory_space<smem>>
    %c0_59 = arith.constant 0 : index
    %c1_60 = arith.constant 1 : index
    %131 = memref.load %arg1[%c0_59, %c1_60] : memref<2x8xf32, #tpu.memory_space<smem>>
    %c0_61 = arith.constant 0 : index
    %c2_62 = arith.constant 2 : index
    %132 = memref.load %arg1[%c0_61, %c2_62] : memref<2x8xf32, #tpu.memory_space<smem>>
    %c0_63 = arith.constant 0 : index
    %c3_64 = arith.constant 3 : index
    %133 = memref.load %arg1[%c0_63, %c3_64] : memref<2x8xf32, #tpu.memory_space<smem>>
    %c0_65 = arith.constant 0 : index
    %c4_66 = arith.constant 4 : index
    %134 = memref.load %arg1[%c0_65, %c4_66] : memref<2x8xf32, #tpu.memory_space<smem>>
    %c0_67 = arith.constant 0 : index
    %c5_68 = arith.constant 5 : index
    %135 = memref.load %arg1[%c0_67, %c5_68] : memref<2x8xf32, #tpu.memory_space<smem>>
    %c0_69 = arith.constant 0 : index
    %c6_70 = arith.constant 6 : index
    %136 = memref.load %arg1[%c0_69, %c6_70] : memref<2x8xf32, #tpu.memory_space<smem>>
    %137 = vector.extract_strided_slice %129 {offsets = [0, 0], sizes = [8, 8], strides = [1, 1]} : vector<32x8xf32> to vector<8x8xf32>
    %138 = vector.extract_strided_slice %129 {offsets = [16, 0], sizes = [8, 8], strides = [1, 1]} : vector<32x8xf32> to vector<8x8xf32>
    %139 = vector.extract_strided_slice %137 {offsets = [0, 0], sizes = [8, 1], strides = [1, 1]} : vector<8x8xf32> to vector<8x1xf32>
    %140 = vector.extract_strided_slice %137 {offsets = [0, 1], sizes = [8, 1], strides = [1, 1]} : vector<8x8xf32> to vector<8x1xf32>
    %141 = vector.extract_strided_slice %138 {offsets = [0, 0], sizes = [8, 1], strides = [1, 1]} : vector<8x8xf32> to vector<8x1xf32>
    %142 = vector.extract_strided_slice %138 {offsets = [0, 1], sizes = [8, 1], strides = [1, 1]} : vector<8x8xf32> to vector<8x1xf32>
    %143 = vector.broadcast %131 : f32 to vector<8x1xf32>
    %144 = arith.mulf %141, %143 : vector<8x1xf32>
    %145 = vector.broadcast %133 : f32 to vector<8x1xf32>
    %146 = arith.mulf %142, %145 : vector<8x1xf32>
    %147 = arith.addf %144, %146 : vector<8x1xf32>
    %148 = vector.broadcast %130 : f32 to vector<8x1xf32>
    %149 = arith.mulf %148, %147 : vector<8x1xf32>
    %150 = vector.broadcast %135 : f32 to vector<8x1xf32>
    %151 = arith.addf %149, %150 : vector<8x1xf32>
    %152 = vector.broadcast %132 : f32 to vector<8x1xf32>
    %153 = arith.mulf %141, %152 : vector<8x1xf32>
    %154 = vector.broadcast %134 : f32 to vector<8x1xf32>
    %155 = arith.mulf %142, %154 : vector<8x1xf32>
    %156 = arith.addf %153, %155 : vector<8x1xf32>
    %157 = vector.broadcast %130 : f32 to vector<8x1xf32>
    %158 = arith.mulf %157, %156 : vector<8x1xf32>
    %159 = vector.broadcast %136 : f32 to vector<8x1xf32>
    %160 = arith.addf %158, %159 : vector<8x1xf32>
    %161 = arith.subf %139, %151 : vector<8x1xf32>
    %162 = math.absf %161 : vector<8x1xf32>
    %163 = arith.subf %140, %160 : vector<8x1xf32>
    %164 = math.absf %163 : vector<8x1xf32>
    %165 = arith.addf %162, %164 : vector<8x1xf32>
    %166 = vector.shape_cast %165 : vector<8x1xf32> to vector<1x8x1xf32>
    %cst_71 = arith.constant dense<0.000000e+00> : vector<1xf32>
    %167 = vector.multi_reduction <add>, %166, %cst_71 [1, 2] : vector<1x8x1xf32> to vector<1xf32>
    %168 = vector.shape_cast %167 : vector<1xf32> to vector<1x1x1xf32>
    %169 = vector.extract %168[0, 0, 0] : f32 from vector<1x1x1xf32>
    %cst_72 = arith.constant 0.000000e+00 : f32
    %170 = arith.addf %cst_72, %169 : f32
    %171 = arith.mulf %130, %131 : f32
    %172 = arith.mulf %130, %133 : f32
    %173 = arith.mulf %130, %132 : f32
    %174 = arith.mulf %130, %134 : f32
    %175 = vector.extract_strided_slice %137 {offsets = [0, 2], sizes = [8, 1], strides = [1, 1]} : vector<8x8xf32> to vector<8x1xf32>
    %cst_73 = arith.constant 1.000000e-01 : f32
    %176 = vector.broadcast %cst_73 : f32 to vector<8x1xf32>
    %177 = arith.mulf %176, %175 : vector<8x1xf32>
    %cst_74 = arith.constant 1.000000e+00 : f32
    %178 = vector.broadcast %cst_74 : f32 to vector<8x1xf32>
    %179 = arith.addf %178, %177 : vector<8x1xf32>
    %180 = vector.extract_strided_slice %137 {offsets = [0, 3], sizes = [8, 1], strides = [1, 1]} : vector<8x8xf32> to vector<8x1xf32>
    %cst_75 = arith.constant 1.000000e-01 : f32
    %181 = vector.broadcast %cst_75 : f32 to vector<8x1xf32>
    %182 = arith.mulf %181, %180 : vector<8x1xf32>
    %183 = vector.extract_strided_slice %137 {offsets = [0, 4], sizes = [8, 1], strides = [1, 1]} : vector<8x8xf32> to vector<8x1xf32>
    %cst_76 = arith.constant 1.000000e-01 : f32
    %184 = vector.broadcast %cst_76 : f32 to vector<8x1xf32>
    %185 = arith.mulf %184, %183 : vector<8x1xf32>
    %186 = vector.extract_strided_slice %137 {offsets = [0, 5], sizes = [8, 1], strides = [1, 1]} : vector<8x8xf32> to vector<8x1xf32>
    %cst_77 = arith.constant 1.000000e-01 : f32
    %187 = vector.broadcast %cst_77 : f32 to vector<8x1xf32>
    %188 = arith.mulf %187, %186 : vector<8x1xf32>
    %cst_78 = arith.constant 1.000000e+00 : f32
    %189 = vector.broadcast %cst_78 : f32 to vector<8x1xf32>
    %190 = arith.addf %189, %188 : vector<8x1xf32>
    %191 = vector.extract_strided_slice %138 {offsets = [0, 2], sizes = [8, 1], strides = [1, 1]} : vector<8x8xf32> to vector<8x1xf32>
    %cst_79 = arith.constant 1.000000e-01 : f32
    %192 = vector.broadcast %cst_79 : f32 to vector<8x1xf32>
    %193 = arith.mulf %192, %191 : vector<8x1xf32>
    %cst_80 = arith.constant 1.000000e+00 : f32
    %194 = vector.broadcast %cst_80 : f32 to vector<8x1xf32>
    %195 = arith.addf %194, %193 : vector<8x1xf32>
    %196 = vector.extract_strided_slice %138 {offsets = [0, 3], sizes = [8, 1], strides = [1, 1]} : vector<8x8xf32> to vector<8x1xf32>
    %cst_81 = arith.constant 1.000000e-01 : f32
    %197 = vector.broadcast %cst_81 : f32 to vector<8x1xf32>
    %198 = arith.mulf %197, %196 : vector<8x1xf32>
    %199 = vector.extract_strided_slice %138 {offsets = [0, 4], sizes = [8, 1], strides = [1, 1]} : vector<8x8xf32> to vector<8x1xf32>
    %cst_82 = arith.constant 1.000000e-01 : f32
    %200 = vector.broadcast %cst_82 : f32 to vector<8x1xf32>
    %201 = arith.mulf %200, %199 : vector<8x1xf32>
    %202 = vector.extract_strided_slice %138 {offsets = [0, 5], sizes = [8, 1], strides = [1, 1]} : vector<8x8xf32> to vector<8x1xf32>
    %cst_83 = arith.constant 1.000000e-01 : f32
    %203 = vector.broadcast %cst_83 : f32 to vector<8x1xf32>
    %204 = arith.mulf %203, %202 : vector<8x1xf32>
    %cst_84 = arith.constant 1.000000e+00 : f32
    %205 = vector.broadcast %cst_84 : f32 to vector<8x1xf32>
    %206 = arith.addf %205, %204 : vector<8x1xf32>
    %207 = arith.mulf %179, %190 : vector<8x1xf32>
    %208 = arith.mulf %182, %185 : vector<8x1xf32>
    %209 = arith.subf %207, %208 : vector<8x1xf32>
    %cst_85 = arith.constant 1.000000e+00 : f32
    %210 = vector.broadcast %cst_85 : f32 to vector<8x1xf32>
    %211 = arith.divf %210, %209 : vector<8x1xf32>
    %212 = arith.mulf %190, %211 : vector<8x1xf32>
    %cst_86 = arith.constant 0.000000e+00 : f32
    %213 = vector.broadcast %cst_86 : f32 to vector<8x1xf32>
    %214 = arith.subf %213, %182 : vector<8x1xf32>
    %215 = arith.mulf %214, %211 : vector<8x1xf32>
    %cst_87 = arith.constant 0.000000e+00 : f32
    %216 = vector.broadcast %cst_87 : f32 to vector<8x1xf32>
    %217 = arith.subf %216, %185 : vector<8x1xf32>
    %218 = arith.mulf %217, %211 : vector<8x1xf32>
    %219 = arith.mulf %179, %211 : vector<8x1xf32>
    %220 = vector.broadcast %171 : f32 to vector<8x1xf32>
    %221 = arith.mulf %220, %195 : vector<8x1xf32>
    %222 = vector.broadcast %172 : f32 to vector<8x1xf32>
    %223 = arith.mulf %222, %201 : vector<8x1xf32>
    %224 = arith.addf %221, %223 : vector<8x1xf32>
    %225 = vector.broadcast %171 : f32 to vector<8x1xf32>
    %226 = arith.mulf %225, %198 : vector<8x1xf32>
    %227 = vector.broadcast %172 : f32 to vector<8x1xf32>
    %228 = arith.mulf %227, %206 : vector<8x1xf32>
    %229 = arith.addf %226, %228 : vector<8x1xf32>
    %230 = vector.broadcast %173 : f32 to vector<8x1xf32>
    %231 = arith.mulf %230, %195 : vector<8x1xf32>
    %232 = vector.broadcast %174 : f32 to vector<8x1xf32>
    %233 = arith.mulf %232, %201 : vector<8x1xf32>
    %234 = arith.addf %231, %233 : vector<8x1xf32>
    %235 = vector.broadcast %173 : f32 to vector<8x1xf32>
    %236 = arith.mulf %235, %198 : vector<8x1xf32>
    %237 = vector.broadcast %174 : f32 to vector<8x1xf32>
    %238 = arith.mulf %237, %206 : vector<8x1xf32>
    %239 = arith.addf %236, %238 : vector<8x1xf32>
    %240 = arith.mulf %212, %224 : vector<8x1xf32>
    %241 = arith.mulf %215, %234 : vector<8x1xf32>
    %242 = arith.addf %240, %241 : vector<8x1xf32>
    %243 = arith.mulf %212, %229 : vector<8x1xf32>
    %244 = arith.mulf %215, %239 : vector<8x1xf32>
    %245 = arith.addf %243, %244 : vector<8x1xf32>
    %246 = arith.mulf %218, %224 : vector<8x1xf32>
    %247 = arith.mulf %219, %234 : vector<8x1xf32>
    %248 = arith.addf %246, %247 : vector<8x1xf32>
    %249 = arith.mulf %218, %229 : vector<8x1xf32>
    %250 = arith.mulf %219, %239 : vector<8x1xf32>
    %251 = arith.addf %249, %250 : vector<8x1xf32>
    %cst_88 = arith.constant 1.000000e+00 : f32
    %252 = vector.broadcast %cst_88 : f32 to vector<8x1xf32>
    %253 = arith.subf %242, %252 : vector<8x1xf32>
    %254 = math.absf %253 : vector<8x1xf32>
    %255 = math.absf %245 : vector<8x1xf32>
    %256 = arith.addf %254, %255 : vector<8x1xf32>
    %257 = math.absf %248 : vector<8x1xf32>
    %258 = arith.addf %256, %257 : vector<8x1xf32>
    %cst_89 = arith.constant 1.000000e+00 : f32
    %259 = vector.broadcast %cst_89 : f32 to vector<8x1xf32>
    %260 = arith.subf %251, %259 : vector<8x1xf32>
    %261 = math.absf %260 : vector<8x1xf32>
    %262 = arith.addf %258, %261 : vector<8x1xf32>
    %263 = vector.shape_cast %262 : vector<8x1xf32> to vector<1x8x1xf32>
    %cst_90 = arith.constant dense<0.000000e+00> : vector<1xf32>
    %264 = vector.multi_reduction <add>, %263, %cst_90 [1, 2] : vector<1x8x1xf32> to vector<1xf32>
    %265 = vector.shape_cast %264 : vector<1xf32> to vector<1x1x1xf32>
    %266 = vector.extract %265[0, 0, 0] : f32 from vector<1x1x1xf32>
    %cst_91 = arith.constant 0.000000e+00 : f32
    %267 = arith.addf %cst_91, %266 : f32
    %c1_92 = arith.constant 1 : index
    %c0_93 = arith.constant 0 : index
    %268 = memref.load %arg1[%c1_92, %c0_93] : memref<2x8xf32, #tpu.memory_space<smem>>
    %c1_94 = arith.constant 1 : index
    %c1_95 = arith.constant 1 : index
    %269 = memref.load %arg1[%c1_94, %c1_95] : memref<2x8xf32, #tpu.memory_space<smem>>
    %c1_96 = arith.constant 1 : index
    %c2_97 = arith.constant 2 : index
    %270 = memref.load %arg1[%c1_96, %c2_97] : memref<2x8xf32, #tpu.memory_space<smem>>
    %c1_98 = arith.constant 1 : index
    %c3_99 = arith.constant 3 : index
    %271 = memref.load %arg1[%c1_98, %c3_99] : memref<2x8xf32, #tpu.memory_space<smem>>
    %c1_100 = arith.constant 1 : index
    %c4_101 = arith.constant 4 : index
    %272 = memref.load %arg1[%c1_100, %c4_101] : memref<2x8xf32, #tpu.memory_space<smem>>
    %c1_102 = arith.constant 1 : index
    %c5_103 = arith.constant 5 : index
    %273 = memref.load %arg1[%c1_102, %c5_103] : memref<2x8xf32, #tpu.memory_space<smem>>
    %c1_104 = arith.constant 1 : index
    %c6_105 = arith.constant 6 : index
    %274 = memref.load %arg1[%c1_104, %c6_105] : memref<2x8xf32, #tpu.memory_space<smem>>
    %275 = vector.extract_strided_slice %129 {offsets = [8, 0], sizes = [8, 8], strides = [1, 1]} : vector<32x8xf32> to vector<8x8xf32>
    %276 = vector.extract_strided_slice %129 {offsets = [24, 0], sizes = [8, 8], strides = [1, 1]} : vector<32x8xf32> to vector<8x8xf32>
    %277 = vector.extract_strided_slice %275 {offsets = [0, 0], sizes = [8, 1], strides = [1, 1]} : vector<8x8xf32> to vector<8x1xf32>
    %278 = vector.extract_strided_slice %275 {offsets = [0, 1], sizes = [8, 1], strides = [1, 1]} : vector<8x8xf32> to vector<8x1xf32>
    %279 = vector.extract_strided_slice %276 {offsets = [0, 0], sizes = [8, 1], strides = [1, 1]} : vector<8x8xf32> to vector<8x1xf32>
    %280 = vector.extract_strided_slice %276 {offsets = [0, 1], sizes = [8, 1], strides = [1, 1]} : vector<8x8xf32> to vector<8x1xf32>
    %281 = vector.broadcast %269 : f32 to vector<8x1xf32>
    %282 = arith.mulf %279, %281 : vector<8x1xf32>
    %283 = vector.broadcast %271 : f32 to vector<8x1xf32>
    %284 = arith.mulf %280, %283 : vector<8x1xf32>
    %285 = arith.addf %282, %284 : vector<8x1xf32>
    %286 = vector.broadcast %268 : f32 to vector<8x1xf32>
    %287 = arith.mulf %286, %285 : vector<8x1xf32>
    %288 = vector.broadcast %273 : f32 to vector<8x1xf32>
    %289 = arith.addf %287, %288 : vector<8x1xf32>
    %290 = vector.broadcast %270 : f32 to vector<8x1xf32>
    %291 = arith.mulf %279, %290 : vector<8x1xf32>
    %292 = vector.broadcast %272 : f32 to vector<8x1xf32>
    %293 = arith.mulf %280, %292 : vector<8x1xf32>
    %294 = arith.addf %291, %293 : vector<8x1xf32>
    %295 = vector.broadcast %268 : f32 to vector<8x1xf32>
    %296 = arith.mulf %295, %294 : vector<8x1xf32>
    %297 = vector.broadcast %274 : f32 to vector<8x1xf32>
    %298 = arith.addf %296, %297 : vector<8x1xf32>
    %299 = arith.subf %277, %289 : vector<8x1xf32>
    %300 = math.absf %299 : vector<8x1xf32>
    %301 = arith.subf %278, %298 : vector<8x1xf32>
    %302 = math.absf %301 : vector<8x1xf32>
    %303 = arith.addf %300, %302 : vector<8x1xf32>
    %304 = vector.shape_cast %303 : vector<8x1xf32> to vector<1x8x1xf32>
    %cst_106 = arith.constant dense<0.000000e+00> : vector<1xf32>
    %305 = vector.multi_reduction <add>, %304, %cst_106 [1, 2] : vector<1x8x1xf32> to vector<1xf32>
    %306 = vector.shape_cast %305 : vector<1xf32> to vector<1x1x1xf32>
    %307 = vector.extract %306[0, 0, 0] : f32 from vector<1x1x1xf32>
    %308 = arith.addf %170, %307 : f32
    %309 = arith.mulf %268, %269 : f32
    %310 = arith.mulf %268, %271 : f32
    %311 = arith.mulf %268, %270 : f32
    %312 = arith.mulf %268, %272 : f32
    %313 = vector.extract_strided_slice %275 {offsets = [0, 2], sizes = [8, 1], strides = [1, 1]} : vector<8x8xf32> to vector<8x1xf32>
    %cst_107 = arith.constant 1.000000e-01 : f32
    %314 = vector.broadcast %cst_107 : f32 to vector<8x1xf32>
    %315 = arith.mulf %314, %313 : vector<8x1xf32>
    %cst_108 = arith.constant 1.000000e+00 : f32
    %316 = vector.broadcast %cst_108 : f32 to vector<8x1xf32>
    %317 = arith.addf %316, %315 : vector<8x1xf32>
    %318 = vector.extract_strided_slice %275 {offsets = [0, 3], sizes = [8, 1], strides = [1, 1]} : vector<8x8xf32> to vector<8x1xf32>
    %cst_109 = arith.constant 1.000000e-01 : f32
    %319 = vector.broadcast %cst_109 : f32 to vector<8x1xf32>
    %320 = arith.mulf %319, %318 : vector<8x1xf32>
    %321 = vector.extract_strided_slice %275 {offsets = [0, 4], sizes = [8, 1], strides = [1, 1]} : vector<8x8xf32> to vector<8x1xf32>
    %cst_110 = arith.constant 1.000000e-01 : f32
    %322 = vector.broadcast %cst_110 : f32 to vector<8x1xf32>
    %323 = arith.mulf %322, %321 : vector<8x1xf32>
    %324 = vector.extract_strided_slice %275 {offsets = [0, 5], sizes = [8, 1], strides = [1, 1]} : vector<8x8xf32> to vector<8x1xf32>
    %cst_111 = arith.constant 1.000000e-01 : f32
    %325 = vector.broadcast %cst_111 : f32 to vector<8x1xf32>
    %326 = arith.mulf %325, %324 : vector<8x1xf32>
    %cst_112 = arith.constant 1.000000e+00 : f32
    %327 = vector.broadcast %cst_112 : f32 to vector<8x1xf32>
    %328 = arith.addf %327, %326 : vector<8x1xf32>
    %329 = vector.extract_strided_slice %276 {offsets = [0, 2], sizes = [8, 1], strides = [1, 1]} : vector<8x8xf32> to vector<8x1xf32>
    %cst_113 = arith.constant 1.000000e-01 : f32
    %330 = vector.broadcast %cst_113 : f32 to vector<8x1xf32>
    %331 = arith.mulf %330, %329 : vector<8x1xf32>
    %cst_114 = arith.constant 1.000000e+00 : f32
    %332 = vector.broadcast %cst_114 : f32 to vector<8x1xf32>
    %333 = arith.addf %332, %331 : vector<8x1xf32>
    %334 = vector.extract_strided_slice %276 {offsets = [0, 3], sizes = [8, 1], strides = [1, 1]} : vector<8x8xf32> to vector<8x1xf32>
    %cst_115 = arith.constant 1.000000e-01 : f32
    %335 = vector.broadcast %cst_115 : f32 to vector<8x1xf32>
    %336 = arith.mulf %335, %334 : vector<8x1xf32>
    %337 = vector.extract_strided_slice %276 {offsets = [0, 4], sizes = [8, 1], strides = [1, 1]} : vector<8x8xf32> to vector<8x1xf32>
    %cst_116 = arith.constant 1.000000e-01 : f32
    %338 = vector.broadcast %cst_116 : f32 to vector<8x1xf32>
    %339 = arith.mulf %338, %337 : vector<8x1xf32>
    %340 = vector.extract_strided_slice %276 {offsets = [0, 5], sizes = [8, 1], strides = [1, 1]} : vector<8x8xf32> to vector<8x1xf32>
    %cst_117 = arith.constant 1.000000e-01 : f32
    %341 = vector.broadcast %cst_117 : f32 to vector<8x1xf32>
    %342 = arith.mulf %341, %340 : vector<8x1xf32>
    %cst_118 = arith.constant 1.000000e+00 : f32
    %343 = vector.broadcast %cst_118 : f32 to vector<8x1xf32>
    %344 = arith.addf %343, %342 : vector<8x1xf32>
    %345 = arith.mulf %317, %328 : vector<8x1xf32>
    %346 = arith.mulf %320, %323 : vector<8x1xf32>
    %347 = arith.subf %345, %346 : vector<8x1xf32>
    %cst_119 = arith.constant 1.000000e+00 : f32
    %348 = vector.broadcast %cst_119 : f32 to vector<8x1xf32>
    %349 = arith.divf %348, %347 : vector<8x1xf32>
    %350 = arith.mulf %328, %349 : vector<8x1xf32>
    %cst_120 = arith.constant 0.000000e+00 : f32
    %351 = vector.broadcast %cst_120 : f32 to vector<8x1xf32>
    %352 = arith.subf %351, %320 : vector<8x1xf32>
    %353 = arith.mulf %352, %349 : vector<8x1xf32>
    %cst_121 = arith.constant 0.000000e+00 : f32
    %354 = vector.broadcast %cst_121 : f32 to vector<8x1xf32>
    %355 = arith.subf %354, %323 : vector<8x1xf32>
    %356 = arith.mulf %355, %349 : vector<8x1xf32>
    %357 = arith.mulf %317, %349 : vector<8x1xf32>
    %358 = vector.broadcast %309 : f32 to vector<8x1xf32>
    %359 = arith.mulf %358, %333 : vector<8x1xf32>
    %360 = vector.broadcast %310 : f32 to vector<8x1xf32>
    %361 = arith.mulf %360, %339 : vector<8x1xf32>
    %362 = arith.addf %359, %361 : vector<8x1xf32>
    %363 = vector.broadcast %309 : f32 to vector<8x1xf32>
    %364 = arith.mulf %363, %336 : vector<8x1xf32>
    %365 = vector.broadcast %310 : f32 to vector<8x1xf32>
    %366 = arith.mulf %365, %344 : vector<8x1xf32>
    %367 = arith.addf %364, %366 : vector<8x1xf32>
    %368 = vector.broadcast %311 : f32 to vector<8x1xf32>
    %369 = arith.mulf %368, %333 : vector<8x1xf32>
    %370 = vector.broadcast %312 : f32 to vector<8x1xf32>
    %371 = arith.mulf %370, %339 : vector<8x1xf32>
    %372 = arith.addf %369, %371 : vector<8x1xf32>
    %373 = vector.broadcast %311 : f32 to vector<8x1xf32>
    %374 = arith.mulf %373, %336 : vector<8x1xf32>
    %375 = vector.broadcast %312 : f32 to vector<8x1xf32>
    %376 = arith.mulf %375, %344 : vector<8x1xf32>
    %377 = arith.addf %374, %376 : vector<8x1xf32>
    %378 = arith.mulf %350, %362 : vector<8x1xf32>
    %379 = arith.mulf %353, %372 : vector<8x1xf32>
    %380 = arith.addf %378, %379 : vector<8x1xf32>
    %381 = arith.mulf %350, %367 : vector<8x1xf32>
    %382 = arith.mulf %353, %377 : vector<8x1xf32>
    %383 = arith.addf %381, %382 : vector<8x1xf32>
    %384 = arith.mulf %356, %362 : vector<8x1xf32>
    %385 = arith.mulf %357, %372 : vector<8x1xf32>
    %386 = arith.addf %384, %385 : vector<8x1xf32>
    %387 = arith.mulf %356, %367 : vector<8x1xf32>
    %388 = arith.mulf %357, %377 : vector<8x1xf32>
    %389 = arith.addf %387, %388 : vector<8x1xf32>
    %cst_122 = arith.constant 1.000000e+00 : f32
    %390 = vector.broadcast %cst_122 : f32 to vector<8x1xf32>
    %391 = arith.subf %380, %390 : vector<8x1xf32>
    %392 = math.absf %391 : vector<8x1xf32>
    %393 = math.absf %383 : vector<8x1xf32>
    %394 = arith.addf %392, %393 : vector<8x1xf32>
    %395 = math.absf %386 : vector<8x1xf32>
    %396 = arith.addf %394, %395 : vector<8x1xf32>
    %cst_123 = arith.constant 1.000000e+00 : f32
    %397 = vector.broadcast %cst_123 : f32 to vector<8x1xf32>
    %398 = arith.subf %389, %397 : vector<8x1xf32>
    %399 = math.absf %398 : vector<8x1xf32>
    %400 = arith.addf %396, %399 : vector<8x1xf32>
    %401 = vector.shape_cast %400 : vector<8x1xf32> to vector<1x8x1xf32>
    %cst_124 = arith.constant dense<0.000000e+00> : vector<1xf32>
    %402 = vector.multi_reduction <add>, %401, %cst_124 [1, 2] : vector<1x8x1xf32> to vector<1xf32>
    %403 = vector.shape_cast %402 : vector<1xf32> to vector<1x1x1xf32>
    %404 = vector.extract %403[0, 0, 0] : f32 from vector<1x1x1xf32>
    %405 = arith.addf %267, %404 : f32
    %cst_125 = arith.constant 3.200000e+01 : f32
    %406 = arith.divf %308, %cst_125 : f32
    %c0_126 = arith.constant 0 : index
    %407 = memref.load %arg7[%c0_126] : memref<2xf32, #tpu.memory_space<smem>>
    memref.store %406, %arg7[%c0_126] : memref<2xf32, #tpu.memory_space<smem>>
    %cst_127 = arith.constant 6.400000e+01 : f32
    %408 = arith.divf %405, %cst_127 : f32
    %c1_128 = arith.constant 1 : index
    %409 = memref.load %arg7[%c1_128] : memref<2xf32, #tpu.memory_space<smem>>
    memref.store %408, %arg7[%c1_128] : memref<2xf32, #tpu.memory_space<smem>>
    return
  }
  func.func @transform_0(%arg0: i32, %arg1: memref<2x8xf32, #tpu.memory_space<smem>>) -> (i32, i32) {
    %c0_i32 = arith.constant 0 : i32
    %c0_i32_0 = arith.constant 0 : i32
    %c0_i32_1 = arith.constant 0 : i32
    return %c0_i32, %c0_i32_0 : i32, i32
  }
  func.func @transform_1(%arg0: i32, %arg1: memref<2x8xf32, #tpu.memory_space<smem>>) -> (i32, i32) {
    %c0_i32 = arith.constant 0 : i32
    %c0_i32_0 = arith.constant 0 : i32
    %c0_i32_1 = arith.constant 0 : i32
    return %c0_i32, %c0_i32_0 : i32, i32
  }
  func.func @transform_2(%arg0: i32, %arg1: memref<2x8xf32, #tpu.memory_space<smem>>) -> (i32, i32) {
    %c0_i32 = arith.constant 0 : i32
    %c0_i32_0 = arith.constant 0 : i32
    %c0_i32_1 = arith.constant 0 : i32
    return %c0_i32, %c0_i32_0 : i32, i32
  }
  func.func @transform_3(%arg0: i32, %arg1: memref<2x8xf32, #tpu.memory_space<smem>>) -> (i32, i32) {
    %c0_i32 = arith.constant 0 : i32
    %c0_i32_0 = arith.constant 0 : i32
    %c0_i32_1 = arith.constant 0 : i32
    return %c0_i32, %c0_i32_0 : i32, i32
  }
  func.func @transform_4(%arg0: i32, %arg1: memref<2x8xf32, #tpu.memory_space<smem>>) -> (i32, i32) {
    %c0_i32 = arith.constant 0 : i32
    %c0_i32_0 = arith.constant 0 : i32
    %c0_i32_1 = arith.constant 0 : i32
    return %c0_i32, %c0_i32_0 : i32, i32
  }
  func.func @transform_5(%arg0: i32, %arg1: memref<2x8xf32, #tpu.memory_space<smem>>) -> i32 {
    %c0_i32 = arith.constant 0 : i32
    %c0_i32_0 = arith.constant 0 : i32
    return %c0_i32 : i32
  }
}

</mosaic_0001>

<llo_original>
// kernel: tpu_custom_call.1
$region0: #{tpu_custom_call.1}
  #allocation0 [shape = 'u32[]', space=smem, size = 0x4, offset = 0x4, fixed_abs, tag = 'smem constant byte address 0x4 - core index']
  #allocation1 [shape = 'u32[144,128]{1,0:T(1,128)}', space=vmem, size = 0x12000, scoped, tag = 'internal scratch']
  #allocation2 [shape = 's32[1]{0}', space=sflag, size = 0x4, scoped, tag = 'scoped memory for tpu_custom_call.1']
  #allocation3 [shape = 'u8[1024]{0}', space=smem, size = 0x400, scoped, tag = 'prefetched SMEM operand 0']
  %s0 = inlined_call_operand.vmem [shape: f32[2,8], index: 0, kind: input, shape index: {}]
  %s1 = inlined_call_operand.vmem [shape: f32[8,256], index: 1, kind: input, shape index: {}]
  %s2 = inlined_call_operand.vmem [shape: f32[128,16], index: 2, kind: input, shape index: {}]
  %s3 = inlined_call_operand.vmem [shape: f32[32,16], index: 3, kind: input, shape index: {}]
  %s4 = inlined_call_operand.vmem [shape: f32[256,8], index: 4, kind: input, shape index: {}]
  %s5 = inlined_call_operand.vmem [shape: f32[2,256], index: 5, kind: input, shape index: {}]
  %s6 = inlined_call_operand.hbm [shape: f32[2], index: 6, kind: output, shape index: {}]
  %s7 = sld [smem:[#allocation0]]
  $region30: #{tpu_custom_call.1} parent=0
    _
  %s9 = ssub.s32 1, %s7
  %s10 = scalar_select 0, %s9, %s7
  %s11 = sshll.u32 %s0, 4
  %s12 = int_to_ptr.vmem [resolvable:$true] %s11
  %14 = dma.vmem_to_smem %s12, 32, [#allocation3], [#allocation2]
  %15 = dma.done [#allocation2], 32
  %16 = sfence
  $region1: #{tpu_custom_call.1} parent=0
    #allocation4 [shape = 'u8[512]{0}', space=smem, size = 0x200, scoped, tag = 'output window, operand 0, single buffered']
    #allocation5 [shape = 's32[1]{0}', space=sflag, size = 0x4, scoped, tag = 'scoped memory for tpu_custom_call.1']
    %17 = vsyncpa [#allocation5], 0
    // Predicated region
    $region2: #{tpu_custom_call.1} parent=1 // pred_check
      _
    $region3: #{tpu_custom_call.1} parent=1 // pred_check_branch
      %19 = sbr.rel (0) target = $region5
    $region4: #{tpu_custom_call.1} parent=1 // pred_region
      _
    $region5: #{tpu_custom_call.1} parent=1 // pred_fallthru
      _
    // Predicated region
    $region6: #{tpu_custom_call.1} parent=1 // pred_check
      _
    $region7: #{tpu_custom_call.1} parent=1 // pred_check_branch
      %21 = sbr.rel (0) target = $region9
    $region8: #{tpu_custom_call.1} parent=1 // pred_region
      _
    $region9: #{tpu_custom_call.1} parent=1 // pred_fallthru
      _
    // Predicated region
    $region10: #{tpu_custom_call.1} parent=1 // pred_check
      _
    $region11: #{tpu_custom_call.1} parent=1 // pred_check_branch
      %23 = sbr.rel (0) target = $region13
    $region12: #{tpu_custom_call.1} parent=1 // pred_region
      _
    $region13: #{tpu_custom_call.1} parent=1 // pred_fallthru
      _
    // Predicated region
    $region14: #{tpu_custom_call.1} parent=1 // pred_check
      _
    $region15: #{tpu_custom_call.1} parent=1 // pred_check_branch
      %25 = sbr.rel (0) target = $region17
    $region16: #{tpu_custom_call.1} parent=1 // pred_region
      _
    $region17: #{tpu_custom_call.1} parent=1 // pred_fallthru
      _
    // Predicated region
    $region18: #{tpu_custom_call.1} parent=1 // pred_check
      _
    $region19: #{tpu_custom_call.1} parent=1 // pred_check_branch
      %27 = sbr.rel (0) target = $region21
    $region20: #{tpu_custom_call.1} parent=1 // pred_region
      _
    $region21: #{tpu_custom_call.1} parent=1 // pred_fallthru
      _
    %v28 = vld [vmem:[%s5] ss:$2 sm:$0x3]
    %s29 = scalar_lea.vmem %s5, 1
    %v30 = vld [vmem:[%s29] ss:$2 sm:$0x3]
    %v31 = vlaneseq
    %v32 = vshrl.u32 %v31, 7
    %v33 = vadd.s32 %v32, 8
    %v34 = vcvt.s32.f32 %v32
    %v35 = vcvt.s32.f32 %v33
    %s36 = sld [smem:[#allocation3]]
    %s37 = sld [smem:[#allocation3 + $0x1]]
    %s38 = sld [smem:[#allocation3 + $0x2]]
    %s39 = sld [smem:[#allocation3 + $0x3]]
    %s40 = sld [smem:[#allocation3 + $0x4]]
    %s41 = sld [smem:[#allocation3 + $0x5]]
    %s42 = sld [smem:[#allocation3 + $0x6]]
    %v43 = vstv %s37
    %v44 = vmul.f32 %v28, %v43
    %v45 = vstv %s39
    %v46 = vmul.f32 %v30, %v45
    %v47 = vadd.f32 %v44, %v46
    %v48 = vstv %s36
    %v49 = vmul.f32 %v48, %v47
    %v50 = vstv %s41
    %v51 = vadd.f32 %v49, %v50
    %v52 = vstv %s38
    %v53 = vmul.f32 %v28, %v52
    %v54 = vstv %s40
    %v55 = vmul.f32 %v30, %v54
    %v56 = vadd.f32 %v53, %v55
    %v57 = vmul.f32 %v48, %v56
    %v58 = vstv %s42
    %v59 = vadd.f32 %v57, %v58
    %v60 = vadd.f32 %v51, 1.0
    %v61 = vmul.f32 %v60, 7.5
    %v62 = vadd.f32 %v59, 1.0
    %v63 = vmul.f32 %v62, 7.5
    %v65 = vlaneseq
    %v66 = vshrl.u32 %v65, 7
    %v67 = vsub.s32 0, %v66
    %v68 = vrot.slane %v61, %v67
    %v69 = vlaneseq
    %v70 = vshrl.u32 %v69, 7
    %v71 = vsub.s32 1, %v70
    %v72 = vrot.slane %v61, %v71
    %v75 = vsub.f32 %v68, %v34
    %v76 = vsub.f32 %v72, %v34
    %v77 = vsub.f32 %v68, %v35
    %v78 = vsub.f32 %v72, %v35
    %v79 = vand.u32 2147483647, %v75
    %v80 = vand.u32 2147483647, %v76
    %v81 = vand.u32 2147483647, %v77
    %v82 = vand.u32 2147483647, %v78
    %v83 = vsub.f32 1.0, %v79
    %v84 = vsub.f32 1.0, %v80
    %v85 = vsub.f32 1.0, %v81
    %v86 = vsub.f32 1.0, %v82
    %v87 = vmax.f32 %v83, 0.0
    %v88 = vmax.f32 %v84, 0.0
    %v89 = vmax.f32 %v85, 0.0
    %v90 = vmax.f32 %v86, 0.0
    %v92 = vlaneseq
    %v93 = vshrl.u32 %v92, 7
    %v94 = vsub.s32 0, %v93
    %v95 = vrot.slane %v63, %v94
    %v96 = vlaneseq
    %v97 = vshrl.u32 %v96, 7
    %v98 = vsub.s32 1, %v97
    %v99 = vrot.slane %v63, %v98
    %v102 = vsub.f32 %v95, %v34
    %v103 = vsub.f32 %v99, %v34
    %v104 = vsub.f32 %v95, %v35
    %v105 = vsub.f32 %v99, %v35
    %v106 = vand.u32 2147483647, %v102
    %v107 = vand.u32 2147483647, %v103
    %v108 = vand.u32 2147483647, %v104
    %v109 = vand.u32 2147483647, %v105
    %v110 = vsub.f32 1.0, %v106
    %v111 = vsub.f32 1.0, %v107
    %v112 = vsub.f32 1.0, %v108
    %v113 = vsub.f32 1.0, %v109
    %v114 = vmax.f32 %v110, 0.0
    %v115 = vmax.f32 %v111, 0.0
    %v116 = vmax.f32 %v112, 0.0
    %v117 = vmax.f32 %v113, 0.0
    %v118 = vld [vmem:[%s2] sm:$0xff]
    %v119 = vld [vmem:[%s2 + $0x8] sm:$0xff]
    %v120 = vld [vmem:[%s2 + $0x10] sm:$0xff]
    %v121 = vld [vmem:[%s2 + $0x18] sm:$0xff]
    %v122 = vld [vmem:[%s2 + $0x20] sm:$0xff]
    %v123 = vld [vmem:[%s2 + $0x28] sm:$0xff]
    %v124 = vld [vmem:[%s2 + $0x30] sm:$0xff]
    %v125 = vld [vmem:[%s2 + $0x38] sm:$0xff]
    %vm126 = vcmask 130048
    %v128 = vsel %vm126, %v118, 0
    %v131 = vsel %vm126, %v119, 0
    %v134 = vsel %vm126, %v120, 0
    %v137 = vsel %vm126, %v121, 0
    %v140 = vsel %vm126, %v122, 0
    %v143 = vsel %vm126, %v123, 0
    %v146 = vsel %vm126, %v124, 0
    %v149 = vsel %vm126, %v125, 0
    %151 = vmatprep.subr.mxu0 0.0
    %152 = vmatpush1.msra.mxu0 0.0
    %153 = vmatprep.subr.mxu0 0.0
    %154 = vmatpush1.msra.mxu0 0.0
    %155 = vmatprep.subr.mxu0 0.0
    %156 = vmatpush1.msra.mxu0 0.0
    %157 = vmatprep.subr.mxu0 0.0
    %158 = vmatpush1.msra.mxu0 0.0
    %159 = vmatprep.subr.mxu0 0.0
    %160 = vmatpush1.msra.mxu0 0.0
    %161 = vmatprep.subr.mxu0 0.0
    %162 = vmatpush1.msra.mxu0 0.0
    %163 = vmatprep.subr.mxu0 0.0
    %164 = vmatpush1.msra.mxu0 0.0
    %165 = vmatprep.subr.mxu0 0.0
    %166 = vmatpush1.msra.mxu0 0.0
    %167 = vmatprep.subr.mxu0 0.0
    %168 = vmatpush1.msra.mxu0 0.0
    %169 = vmatprep.subr.mxu0 0.0
    %170 = vmatpush1.msra.mxu0 0.0
    %171 = vmatprep.subr.mxu0 0.0
    %172 = vmatpush1.msra.mxu0 0.0
    %173 = vmatprep.subr.mxu0 0.0
    %174 = vmatpush1.msra.mxu0 0.0
    %175 = vmatprep.subr.mxu0 0.0
    %176 = vmatpush1.msra.mxu0 0.0
    %177 = vmatprep.subr.mxu0 0.0
    %178 = vmatpush1.msra.mxu0 0.0
    %179 = vmatprep.subr.mxu0 %v90
    %180 = vmatpush1.msra.mxu0 %v89
    %181 = vmatprep.subr.mxu0 %v88
    %182 = vmatpush1.msra.mxu0 %v87
    %183 = vmatprep.subr.mxu0 0.0
    %184 = vmatpush2.msra.mxu0 0.0
    %185 = vmatprep.subr.mxu0 0.0
    %186 = vmatpush2.msra.mxu0 0.0
    %187 = vmatprep.subr.mxu0 0.0
    %188 = vmatpush2.msra.mxu0 0.0
    %189 = vmatprep.subr.mxu0 0.0
    %190 = vmatpush2.msra.mxu0 0.0
    %191 = vmatprep.subr.mxu0 0.0
    %192 = vmatpush2.msra.mxu0 0.0
    %193 = vmatprep.subr.mxu0 0.0
    %194 = vmatpush2.msra.mxu0 0.0
    %195 = vmatprep.subr.mxu0 0.0
    %196 = vmatpush2.msra.mxu0 0.0
    %197 = vmatprep.subr.mxu0 0.0
    %198 = vmatpush2.msra.mxu0 0.0
    %199 = vmatprep.subr.mxu0 0.0
    %200 = vmatpush2.msra.mxu0 0.0
    %201 = vmatprep.subr.mxu0 0.0
    %202 = vmatpush2.msra.mxu0 0.0
    %203 = vmatprep.subr.mxu0 0.0
    %204 = vmatpush2.msra.mxu0 0.0
    %205 = vmatprep.subr.mxu0 0.0
    %206 = vmatpush2.msra.mxu0 0.0
    %207 = vmatprep.subr.mxu0 0.0
    %208 = vmatpush2.msra.mxu0 0.0
    %209 = vmatprep.subr.mxu0 0.0
    %210 = vmatpush2.msra.mxu0 0.0
    %211 = vmatprep.subr.mxu0 0.0
    %212 = vmatpush2.msra.mxu0 0.0
    %213 = vmatprep.subr.mxu0 0.0
    %214 = vmatpush2.msra.mxu0 0.0
    %215 = vmatprep.mubr.f32.mxu0 0.0
    %216 = vmatmul.mubr.f32.gmra.mxu0 %v128
    %v217 = vpop.f32.mrf.mxu0
    %v218 = vadd.f32 0.0, %v217
    %v219 = vpop.f32.mrf.mxu0
    %v220 = vadd.f32 0.0, %v219
    %221 = vmatprep.mubr.f32.mxu0 0.0
    %222 = vmatmul.mubr.f32.gmra.mxu0 %v131
    %v223 = vpop.f32.mrf.mxu0
    %v224 = vadd.f32 0.0, %v223
    %v225 = vpop.f32.mrf.mxu0
    %v226 = vadd.f32 0.0, %v225
    %227 = vmatprep.mubr.f32.mxu0 0.0
    %228 = vmatmul.mubr.f32.gmra.mxu0 %v134
    %v229 = vpop.f32.mrf.mxu0
    %v230 = vadd.f32 0.0, %v229
    %v231 = vpop.f32.mrf.mxu0
    %v232 = vadd.f32 0.0, %v231
    %233 = vmatprep.mubr.f32.mxu0 0.0
    %234 = vmatmul.mubr.f32.gmra.mxu0 %v137
    %v235 = vpop.f32.mrf.mxu0
    %v236 = vadd.f32 0.0, %v235
    %v237 = vpop.f32.mrf.mxu0
    %v238 = vadd.f32 0.0, %v237
    %239 = vmatprep.mubr.f32.mxu0 0.0
    %240 = vmatmul.mubr.f32.gmra.mxu0 %v140
    %v241 = vpop.f32.mrf.mxu0
    %v242 = vadd.f32 0.0, %v241
    %v243 = vpop.f32.mrf.mxu0
    %v244 = vadd.f32 0.0, %v243
    %245 = vmatprep.mubr.f32.mxu0 0.0
    %246 = vmatmul.mubr.f32.gmra.mxu0 %v143
    %v247 = vpop.f32.mrf.mxu0
    %v248 = vadd.f32 0.0, %v247
    %v249 = vpop.f32.mrf.mxu0
    %v250 = vadd.f32 0.0, %v249
    %251 = vmatprep.mubr.f32.mxu0 0.0
    %252 = vmatmul.mubr.f32.gmra.mxu0 %v146
    %v253 = vpop.f32.mrf.mxu0
    %v254 = vadd.f32 0.0, %v253
    %v255 = vpop.f32.mrf.mxu0
    %v256 = vadd.f32 0.0, %v255
    %257 = vmatprep.mubr.f32.mxu0 0.0
    %258 = vmatmul.mubr.f32.gmra.mxu0 %v149
    %v259 = vpop.f32.mrf.mxu0
    %v260 = vadd.f32 0.0, %v259
    %v261 = vpop.f32.mrf.mxu0
    %v262 = vadd.f32 0.0, %v261
    %263 = vdwg.mxu0
    %v264 = vmul.f32 %v218, %v114
    %v265 = vmul.f32 %v220, %v115
    %v266 = vmul.f32 %v224, %v116
    %v267 = vmul.f32 %v226, %v117
    %v268 = vmul.f32 %v230, %v114
    %v269 = vmul.f32 %v232, %v115
    %v270 = vmul.f32 %v236, %v116
    %v271 = vmul.f32 %v238, %v117
    %v272 = vmul.f32 %v242, %v114
    %v273 = vmul.f32 %v244, %v115
    %v274 = vmul.f32 %v248, %v116
    %v275 = vmul.f32 %v250, %v117
    %v276 = vmul.f32 %v254, %v114
    %v277 = vmul.f32 %v256, %v115
    %v278 = vmul.f32 %v260, %v116
    %v279 = vmul.f32 %v262, %v117
    %v280 = vadd.f32 %v264, %v266
    %v281 = vrot.slane %v280, 4
    %v282 = vadd.f32 %v280, %v281
    %v283 = vrot.slane %v282, 2
    %v284 = vadd.f32 %v282, %v283
    %v285 = vrot.slane %v284, 1
    %v286 = vadd.f32 %v284, %v285
    %v287 = vadd.f32 %v265, %v267
    %v288 = vrot.slane %v287, 4
    %v289 = vadd.f32 %v287, %v288
    %v290 = vrot.slane %v289, 2
    %v291 = vadd.f32 %v289, %v290
    %v292 = vrot.slane %v291, 1
    %v293 = vadd.f32 %v291, %v292
    %v294 = vadd.f32 %v268, %v270
    %v295 = vrot.slane %v294, 4
    %v296 = vadd.f32 %v294, %v295
    %v297 = vrot.slane %v296, 2
    %v298 = vadd.f32 %v296, %v297
    %v299 = vrot.slane %v298, 1
    %v300 = vadd.f32 %v298, %v299
    %v301 = vadd.f32 %v269, %v271
    %v302 = vrot.slane %v301, 4
    %v303 = vadd.f32 %v301, %v302
    %v304 = vrot.slane %v303, 2
    %v305 = vadd.f32 %v303, %v304
    %v306 = vrot.slane %v305, 1
    %v307 = vadd.f32 %v305, %v306
    %v308 = vadd.f32 %v272, %v274
    %v309 = vrot.slane %v308, 4
    %v310 = vadd.f32 %v308, %v309
    %v311 = vrot.slane %v310, 2
    %v312 = vadd.f32 %v310, %v311
    %v313 = vrot.slane %v312, 1
    %v314 = vadd.f32 %v312, %v313
    %v315 = vadd.f32 %v273, %v275
    %v316 = vrot.slane %v315, 4
    %v317 = vadd.f32 %v315, %v316
    %v318 = vrot.slane %v317, 2
    %v319 = vadd.f32 %v317, %v318
    %v320 = vrot.slane %v319, 1
    %v321 = vadd.f32 %v319, %v320
    %v322 = vadd.f32 %v276, %v278
    %v323 = vrot.slane %v322, 4
    %v324 = vadd.f32 %v322, %v323
    %v325 = vrot.slane %v324, 2
    %v326 = vadd.f32 %v324, %v325
    %v327 = vrot.slane %v326, 1
    %v328 = vadd.f32 %v326, %v327
    %v329 = vadd.f32 %v277, %v279
    %v330 = vrot.slane %v329, 4
    %v331 = vadd.f32 %v329, %v330
    %v332 = vrot.slane %v331, 2
    %v333 = vadd.f32 %v331, %v332
    %v334 = vrot.slane %v333, 1
    %v335 = vadd.f32 %v333, %v334
    %s336 = sld [smem:[#allocation3 + $0x80]]
    %s337 = sld [smem:[#allocation3 + $0x81]]
    %s338 = sld [smem:[#allocation3 + $0x82]]
    %s339 = sld [smem:[#allocation3 + $0x83]]
    %s340 = sld [smem:[#allocation3 + $0x84]]
    %s341 = sld [smem:[#allocation3 + $0x85]]
    %s342 = sld [smem:[#allocation3 + $0x86]]
    %v343 = vstv %s337
    %v344 = vmul.f32 %v28, %v343
    %v345 = vstv %s339
    %v346 = vmul.f32 %v30, %v345
    %v347 = vadd.f32 %v344, %v346
    %v348 = vstv %s336
    %v349 = vmul.f32 %v348, %v347
    %v350 = vstv %s341
    %v351 = vadd.f32 %v349, %v350
    %v352 = vstv %s338
    %v353 = vmul.f32 %v28, %v352
    %v354 = vstv %s340
    %v355 = vmul.f32 %v30, %v354
    %v356 = vadd.f32 %v353, %v355
    %v357 = vmul.f32 %v348, %v356
    %v358 = vstv %s342
    %v359 = vadd.f32 %v357, %v358
    %v360 = vadd.f32 %v351, 1.0
    %v361 = vmul.f32 %v360, 7.5
    %v362 = vadd.f32 %v359, 1.0
    %v363 = vmul.f32 %v362, 7.5
    %v365 = vlaneseq
    %v366 = vshrl.u32 %v365, 7
    %v367 = vsub.s32 0, %v366
    %v368 = vrot.slane %v361, %v367
    %v369 = vlaneseq
    %v370 = vshrl.u32 %v369, 7
    %v371 = vsub.s32 1, %v370
    %v372 = vrot.slane %v361, %v371
    %v375 = vsub.f32 %v368, %v34
    %v376 = vsub.f32 %v372, %v34
    %v377 = vsub.f32 %v368, %v35
    %v378 = vsub.f32 %v372, %v35
    %v379 = vand.u32 2147483647, %v375
    %v380 = vand.u32 2147483647, %v376
    %v381 = vand.u32 2147483647, %v377
    %v382 = vand.u32 2147483647, %v378
    %v383 = vsub.f32 1.0, %v379
    %v384 = vsub.f32 1.0, %v380
    %v385 = vsub.f32 1.0, %v381
    %v386 = vsub.f32 1.0, %v382
    %v387 = vmax.f32 %v383, 0.0
    %v388 = vmax.f32 %v384, 0.0
    %v389 = vmax.f32 %v385, 0.0
    %v390 = vmax.f32 %v386, 0.0
    %v392 = vlaneseq
    %v393 = vshrl.u32 %v392, 7
    %v394 = vsub.s32 0, %v393
    %v395 = vrot.slane %v363, %v394
    %v396 = vlaneseq
    %v397 = vshrl.u32 %v396, 7
    %v398 = vsub.s32 1, %v397
    %v399 = vrot.slane %v363, %v398
    %v402 = vsub.f32 %v395, %v34
    %v403 = vsub.f32 %v399, %v34
    %v404 = vsub.f32 %v395, %v35
    %v405 = vsub.f32 %v399, %v35
    %v406 = vand.u32 2147483647, %v402
    %v407 = vand.u32 2147483647, %v403
    %v408 = vand.u32 2147483647, %v404
    %v409 = vand.u32 2147483647, %v405
    %v410 = vsub.f32 1.0, %v406
    %v411 = vsub.f32 1.0, %v407
    %v412 = vsub.f32 1.0, %v408
    %v413 = vsub.f32 1.0, %v409
    %v414 = vmax.f32 %v410, 0.0
    %v415 = vmax.f32 %v411, 0.0
    %v416 = vmax.f32 %v412, 0.0
    %v417 = vmax.f32 %v413, 0.0
    %v418 = vld [vmem:[%s2 + $0x40] sm:$0xff]
    %v419 = vld [vmem:[%s2 + $0x48] sm:$0xff]
    %v420 = vld [vmem:[%s2 + $0x50] sm:$0xff]
    %v421 = vld [vmem:[%s2 + $0x58] sm:$0xff]
    %v422 = vld [vmem:[%s2 + $0x60] sm:$0xff]
    %v423 = vld [vmem:[%s2 + $0x68] sm:$0xff]
    %v424 = vld [vmem:[%s2 + $0x70] sm:$0xff]
    %v425 = vld [vmem:[%s2 + $0x78] sm:$0xff]
    %v427 = vsel %vm126, %v418, 0
    %v430 = vsel %vm126, %v419, 0
    %v433 = vsel %vm126, %v420, 0
    %v436 = vsel %vm126, %v421, 0
    %v439 = vsel %vm126, %v422, 0
    %v442 = vsel %vm126, %v423, 0
    %v445 = vsel %vm126, %v424, 0
    %v448 = vsel %vm126, %v425, 0
    %450 = vmatprep.subr.mxu0 0.0
    %451 = vmatpush1.msra.mxu0 0.0
    %452 = vmatprep.subr.mxu0 0.0
    %453 = vmatpush1.msra.mxu0 0.0
    %454 = vmatprep.subr.mxu0 0.0
    %455 = vmatpush1.msra.mxu0 0.0
    %456 = vmatprep.subr.mxu0 0.0
    %457 = vmatpush1.msra.mxu0 0.0
    %458 = vmatprep.subr.mxu0 0.0
    %459 = vmatpush1.msra.mxu0 0.0
    %460 = vmatprep.subr.mxu0 0.0
    %461 = vmatpush1.msra.mxu0 0.0
    %462 = vmatprep.subr.mxu0 0.0
    %463 = vmatpush1.msra.mxu0 0.0
    %464 = vmatprep.subr.mxu0 0.0
    %465 = vmatpush1.msra.mxu0 0.0
    %466 = vmatprep.subr.mxu0 0.0
    %467 = vmatpush1.msra.mxu0 0.0
    %468 = vmatprep.subr.mxu0 0.0
    %469 = vmatpush1.msra.mxu0 0.0
    %470 = vmatprep.subr.mxu0 0.0
    %471 = vmatpush1.msra.mxu0 0.0
    %472 = vmatprep.subr.mxu0 0.0
    %473 = vmatpush1.msra.mxu0 0.0
    %474 = vmatprep.subr.mxu0 0.0
    %475 = vmatpush1.msra.mxu0 0.0
    %476 = vmatprep.subr.mxu0 0.0
    %477 = vmatpush1.msra.mxu0 0.0
    %478 = vmatprep.subr.mxu0 %v390
    %479 = vmatpush1.msra.mxu0 %v389
    %480 = vmatprep.subr.mxu0 %v388
    %481 = vmatpush1.msra.mxu0 %v387
    %482 = vmatprep.subr.mxu0 0.0
    %483 = vmatpush2.msra.mxu0 0.0
    %484 = vmatprep.subr.mxu0 0.0
    %485 = vmatpush2.msra.mxu0 0.0
    %486 = vmatprep.subr.mxu0 0.0
    %487 = vmatpush2.msra.mxu0 0.0
    %488 = vmatprep.subr.mxu0 0.0
    %489 = vmatpush2.msra.mxu0 0.0
    %490 = vmatprep.subr.mxu0 0.0
    %491 = vmatpush2.msra.mxu0 0.0
    %492 = vmatprep.subr.mxu0 0.0
    %493 = vmatpush2.msra.mxu0 0.0
    %494 = vmatprep.subr.mxu0 0.0
    %495 = vmatpush2.msra.mxu0 0.0
    %496 = vmatprep.subr.mxu0 0.0
    %497 = vmatpush2.msra.mxu0 0.0
    %498 = vmatprep.subr.mxu0 0.0
    %499 = vmatpush2.msra.mxu0 0.0
    %500 = vmatprep.subr.mxu0 0.0
    %501 = vmatpush2.msra.mxu0 0.0
    %502 = vmatprep.subr.mxu0 0.0
    %503 = vmatpush2.msra.mxu0 0.0
    %504 = vmatprep.subr.mxu0 0.0
    %505 = vmatpush2.msra.mxu0 0.0
    %506 = vmatprep.subr.mxu0 0.0
    %507 = vmatpush2.msra.mxu0 0.0
    %508 = vmatprep.subr.mxu0 0.0
    %509 = vmatpush2.msra.mxu0 0.0
    %510 = vmatprep.subr.mxu0 0.0
    %511 = vmatpush2.msra.mxu0 0.0
    %512 = vmatprep.subr.mxu0 0.0
    %513 = vmatpush2.msra.mxu0 0.0
    %514 = vmatprep.mubr.f32.mxu0 0.0
    %515 = vmatmul.mubr.f32.gmra.mxu0 %v427
    %v516 = vpop.f32.mrf.mxu0
    %v517 = vadd.f32 0.0, %v516
    %v518 = vpop.f32.mrf.mxu0
    %v519 = vadd.f32 0.0, %v518
    %520 = vmatprep.mubr.f32.mxu0 0.0
    %521 = vmatmul.mubr.f32.gmra.mxu0 %v430
    %v522 = vpop.f32.mrf.mxu0
    %v523 = vadd.f32 0.0, %v522
    %v524 = vpop.f32.mrf.mxu0
    %v525 = vadd.f32 0.0, %v524
    %526 = vmatprep.mubr.f32.mxu0 0.0
    %527 = vmatmul.mubr.f32.gmra.mxu0 %v433
    %v528 = vpop.f32.mrf.mxu0
    %v529 = vadd.f32 0.0, %v528
    %v530 = vpop.f32.mrf.mxu0
    %v531 = vadd.f32 0.0, %v530
    %532 = vmatprep.mubr.f32.mxu0 0.0
    %533 = vmatmul.mubr.f32.gmra.mxu0 %v436
    %v534 = vpop.f32.mrf.mxu0
    %v535 = vadd.f32 0.0, %v534
    %v536 = vpop.f32.mrf.mxu0
    %v537 = vadd.f32 0.0, %v536
    %538 = vmatprep.mubr.f32.mxu0 0.0
    %539 = vmatmul.mubr.f32.gmra.mxu0 %v439
    %v540 = vpop.f32.mrf.mxu0
    %v541 = vadd.f32 0.0, %v540
    %v542 = vpop.f32.mrf.mxu0
    %v543 = vadd.f32 0.0, %v542
    %544 = vmatprep.mubr.f32.mxu0 0.0
    %545 = vmatmul.mubr.f32.gmra.mxu0 %v442
    %v546 = vpop.f32.mrf.mxu0
    %v547 = vadd.f32 0.0, %v546
    %v548 = vpop.f32.mrf.mxu0
    %v549 = vadd.f32 0.0, %v548
    %550 = vmatprep.mubr.f32.mxu0 0.0
    %551 = vmatmul.mubr.f32.gmra.mxu0 %v445
    %v552 = vpop.f32.mrf.mxu0
    %v553 = vadd.f32 0.0, %v552
    %v554 = vpop.f32.mrf.mxu0
    %v555 = vadd.f32 0.0, %v554
    %556 = vmatprep.mubr.f32.mxu0 0.0
    %557 = vmatmul.mubr.f32.gmra.mxu0 %v448
    %v558 = vpop.f32.mrf.mxu0
    %v559 = vadd.f32 0.0, %v558
    %v560 = vpop.f32.mrf.mxu0
    %v561 = vadd.f32 0.0, %v560
    %562 = vdwg.mxu0
    %v563 = vmul.f32 %v517, %v414
    %v564 = vmul.f32 %v519, %v415
    %v565 = vmul.f32 %v523, %v416
    %v566 = vmul.f32 %v525, %v417
    %v567 = vmul.f32 %v529, %v414
    %v568 = vmul.f32 %v531, %v415
    %v569 = vmul.f32 %v535, %v416
    %v570 = vmul.f32 %v537, %v417
    %v571 = vmul.f32 %v541, %v414
    %v572 = vmul.f32 %v543, %v415
    %v573 = vmul.f32 %v547, %v416
    %v574 = vmul.f32 %v549, %v417
    %v575 = vmul.f32 %v553, %v414
    %v576 = vmul.f32 %v555, %v415
    %v577 = vmul.f32 %v559, %v416
    %v578 = vmul.f32 %v561, %v417
    %v579 = vadd.f32 %v563, %v565
    %v580 = vrot.slane %v579, 4
    %v581 = vadd.f32 %v579, %v580
    %v582 = vrot.slane %v581, 2
    %v583 = vadd.f32 %v581, %v582
    %v584 = vrot.slane %v583, 1
    %v585 = vadd.f32 %v583, %v584
    %v586 = vadd.f32 %v564, %v566
    %v587 = vrot.slane %v586, 4
    %v588 = vadd.f32 %v586, %v587
    %v589 = vrot.slane %v588, 2
    %v590 = vadd.f32 %v588, %v589
    %v591 = vrot.slane %v590, 1
    %v592 = vadd.f32 %v590, %v591
    %v593 = vadd.f32 %v567, %v569
    %v594 = vrot.slane %v593, 4
    %v595 = vadd.f32 %v593, %v594
    %v596 = vrot.slane %v595, 2
    %v597 = vadd.f32 %v595, %v596
    %v598 = vrot.slane %v597, 1
    %v599 = vadd.f32 %v597, %v598
    %v600 = vadd.f32 %v568, %v570
    %v601 = vrot.slane %v600, 4
    %v602 = vadd.f32 %v600, %v601
    %v603 = vrot.slane %v602, 2
    %v604 = vadd.f32 %v602, %v603
    %v605 = vrot.slane %v604, 1
    %v606 = vadd.f32 %v604, %v605
    %v607 = vadd.f32 %v571, %v573
    %v608 = vrot.slane %v607, 4
    %v609 = vadd.f32 %v607, %v608
    %v610 = vrot.slane %v609, 2
    %v611 = vadd.f32 %v609, %v610
    %v612 = vrot.slane %v611, 1
    %v613 = vadd.f32 %v611, %v612
    %v614 = vadd.f32 %v572, %v574
    %v615 = vrot.slane %v614, 4
    %v616 = vadd.f32 %v614, %v615
    %v617 = vrot.slane %v616, 2
    %v618 = vadd.f32 %v616, %v617
    %v619 = vrot.slane %v618, 1
    %v620 = vadd.f32 %v618, %v619
    %v621 = vadd.f32 %v575, %v577
    %v622 = vrot.slane %v621, 4
    %v623 = vadd.f32 %v621, %v622
    %v624 = vrot.slane %v623, 2
    %v625 = vadd.f32 %v623, %v624
    %v626 = vrot.slane %v625, 1
    %v627 = vadd.f32 %v625, %v626
    %v628 = vadd.f32 %v576, %v578
    %v629 = vrot.slane %v628, 4
    %v630 = vadd.f32 %v628, %v629
    %v631 = vrot.slane %v630, 2
    %v632 = vadd.f32 %v630, %v631
    %v633 = vrot.slane %v632, 1
    %v634 = vadd.f32 %v632, %v633
    %v635 = vld [vmem:[%s1] sm:$0xff]
    %v636 = vld [vmem:[%s1 + $0x8] sm:$0xff]
    %vm645 = vcmask 1041409
    %v646 = vsel %vm645, %v300, %v286
    %vm647 = vcmask 1042434
    %v648 = vsel %vm647, %v314, %v646
    %vm649 = vcmask 1043459
    %v650 = vsel %vm649, %v328, %v648
    %v651 = vsel %vm645, %v307, %v293
    %v652 = vsel %vm647, %v321, %v651
    %v653 = vsel %vm649, %v335, %v652
    %vm664 = vcmask 1045509
    %v665 = vsel %vm664, %v599, %v585
    %vm666 = vcmask 1046534
    %v667 = vsel %vm666, %v613, %v665
    %vm668 = vcmask 1047559
    %v669 = vsel %vm668, %v627, %v667
    %v670 = vsel %vm664, %v606, %v592
    %v671 = vsel %vm666, %v620, %v670
    %v672 = vsel %vm668, %v634, %v671
    %vm675 = vcmask 1043456
    %v676 = vsel %vm675, %v650, %v669
    %v677 = vsel %vm675, %v653, %v672
    %v678 = vld [vmem:[%s3] sm:$0xff]
    %v679 = vld [vmem:[%s3 + $0x8] sm:$0xff]
    %v680 = vld [vmem:[%s3 + $0x10] sm:$0xff]
    %v681 = vld [vmem:[%s3 + $0x18] sm:$0xff]
    %v683 = vsel %vm126, %v678, 0
    %v686 = vsel %vm126, %v679, 0
    %v689 = vsel %vm126, %v680, 0
    %v692 = vsel %vm126, %v681, 0
    %694 = vmatprep.subr.mxu0 0.0
    %695 = vmatpush1.msra.mxu0 0.0
    %696 = vmatprep.subr.mxu0 0.0
    %697 = vmatpush1.msra.mxu0 0.0
    %698 = vmatprep.subr.mxu0 0.0
    %699 = vmatpush1.msra.mxu0 0.0
    %700 = vmatprep.subr.mxu0 0.0
    %701 = vmatpush1.msra.mxu0 0.0
    %702 = vmatprep.subr.mxu0 0.0
    %703 = vmatpush1.msra.mxu0 0.0
    %704 = vmatprep.subr.mxu0 0.0
    %705 = vmatpush1.msra.mxu0 0.0
    %706 = vmatprep.subr.mxu0 0.0
    %707 = vmatpush1.msra.mxu0 0.0
    %708 = vmatprep.subr.mxu0 0.0
    %709 = vmatpush1.msra.mxu0 0.0
    %710 = vmatprep.subr.mxu0 0.0
    %711 = vmatpush1.msra.mxu0 0.0
    %712 = vmatprep.subr.mxu0 0.0
    %713 = vmatpush1.msra.mxu0 0.0
    %714 = vmatprep.subr.mxu0 0.0
    %715 = vmatpush1.msra.mxu0 0.0
    %716 = vmatprep.subr.mxu0 0.0
    %717 = vmatpush1.msra.mxu0 0.0
    %718 = vmatprep.subr.mxu0 0.0
    %719 = vmatpush1.msra.mxu0 0.0
    %720 = vmatprep.subr.mxu0 0.0
    %721 = vmatpush1.msra.mxu0 0.0
    %722 = vmatprep.subr.mxu0 %v677
    %723 = vmatpush1.msra.mxu0 %v676
    %724 = vmatprep.subr.mxu0 %v636
    %725 = vmatpush1.msra.mxu0 %v635
    %726 = vmatprep.subr.mxu0 0.0
    %727 = vmatpush2.msra.mxu0 0.0
    %728 = vmatprep.subr.mxu0 0.0
    %729 = vmatpush2.msra.mxu0 0.0
    %730 = vmatprep.subr.mxu0 0.0
    %731 = vmatpush2.msra.mxu0 0.0
    %732 = vmatprep.subr.mxu0 0.0
    %733 = vmatpush2.msra.mxu0 0.0
    %734 = vmatprep.subr.mxu0 0.0
    %735 = vmatpush2.msra.mxu0 0.0
    %736 = vmatprep.subr.mxu0 0.0
    %737 = vmatpush2.msra.mxu0 0.0
    %738 = vmatprep.subr.mxu0 0.0
    %739 = vmatpush2.msra.mxu0 0.0
    %740 = vmatprep.subr.mxu0 0.0
    %741 = vmatpush2.msra.mxu0 0.0
    %742 = vmatprep.subr.mxu0 0.0
    %743 = vmatpush2.msra.mxu0 0.0
    %744 = vmatprep.subr.mxu0 0.0
    %745 = vmatpush2.msra.mxu0 0.0
    %746 = vmatprep.subr.mxu0 0.0
    %747 = vmatpush2.msra.mxu0 0.0
    %748 = vmatprep.subr.mxu0 0.0
    %749 = vmatpush2.msra.mxu0 0.0
    %750 = vmatprep.subr.mxu0 0.0
    %751 = vmatpush2.msra.mxu0 0.0
    %752 = vmatprep.subr.mxu0 0.0
    %753 = vmatpush2.msra.mxu0 0.0
    %754 = vmatprep.subr.mxu0 0.0
    %755 = vmatpush2.msra.mxu0 0.0
    %756 = vmatprep.subr.mxu0 0.0
    %757 = vmatpush2.msra.mxu0 0.0
    %758 = vmatprep.mubr.f32.mxu0 0.0
    %759 = vmatmul.mubr.f32.gmra.mxu0 %v683
    %v760 = vpop.f32.mrf.mxu0
    %v761 = vadd.f32 0.0, %v760
    %v762 = vpop.f32.mrf.mxu0
    %v763 = vadd.f32 0.0, %v762
    %764 = vmatprep.mubr.f32.mxu0 0.0
    %765 = vmatmul.mubr.f32.gmra.mxu0 %v686
    %v766 = vpop.f32.mrf.mxu0
    %v767 = vadd.f32 0.0, %v766
    %v768 = vpop.f32.mrf.mxu0
    %v769 = vadd.f32 0.0, %v768
    %770 = vmatprep.mubr.f32.mxu0 0.0
    %771 = vmatmul.mubr.f32.gmra.mxu0 %v689
    %v772 = vpop.f32.mrf.mxu0
    %v773 = vadd.f32 0.0, %v772
    %v774 = vpop.f32.mrf.mxu0
    %v775 = vadd.f32 0.0, %v774
    %776 = vmatprep.mubr.f32.mxu0 0.0
    %777 = vmatmul.mubr.f32.gmra.mxu0 %v692
    %v778 = vpop.f32.mrf.mxu0
    %v779 = vadd.f32 0.0, %v778
    %v780 = vpop.f32.mrf.mxu0
    %v781 = vadd.f32 0.0, %v780
    %782 = vdwg.mxu0
    %v783 = vmax.f32 %v761, %v763
    %784 = vmax.xlane.f32.xlu0 %v783
    %v785 = vpop.xlane.xlu0 %784
    %v786 = vmax.f32 %v767, %v769
    %787 = vmax.xlane.f32.xlu0 %v786
    %v788 = vpop.xlane.xlu0 %787
    %v789 = vmax.f32 %v773, %v775
    %790 = vmax.xlane.f32.xlu0 %v789
    %v791 = vpop.xlane.xlu0 %790
    %v792 = vmax.f32 %v779, %v781
    %793 = vmax.xlane.f32.xlu0 %v792
    %v794 = vpop.xlane.xlu0 %793
    %v795 = vsub.f32 %v761, %v785
    %v796 = vsub.f32 %v763, %v785
    %v797 = vsub.f32 %v767, %v788
    %v798 = vsub.f32 %v769, %v788
    %v799 = vsub.f32 %v773, %v791
    %v800 = vsub.f32 %v775, %v791
    %v801 = vsub.f32 %v779, %v794
    %v802 = vsub.f32 %v781, %v794
    %v803 = vmul.f32 %v795, 1.442695
    %v804 = vpow.pop %v803
    %v805 = vmul.f32 %v796, 1.442695
    %v806 = vpow.pop %v805
    %v807 = vmul.f32 %v797, 1.442695
    %v808 = vpow.pop %v807
    %v809 = vmul.f32 %v798, 1.442695
    %v810 = vpow.pop %v809
    %v811 = vmul.f32 %v799, 1.442695
    %v812 = vpow.pop %v811
    %v813 = vmul.f32 %v800, 1.442695
    %v814 = vpow.pop %v813
    %v815 = vmul.f32 %v801, 1.442695
    %v816 = vpow.pop %v815
    %v817 = vmul.f32 %v802, 1.442695
    %v818 = vpow.pop %v817
    %v819 = vadd.f32 %v804, %v806
    %820 = vadd.xlane.f32.xlu0 %v819
    %v821 = vpop.xlane.xlu0 %820
    %v822 = vadd.f32 %v808, %v810
    %823 = vadd.xlane.f32.xlu0 %v822
    %v824 = vpop.xlane.xlu0 %823
    %v825 = vadd.f32 %v812, %v814
    %826 = vadd.xlane.f32.xlu0 %v825
    %v827 = vpop.xlane.xlu0 %826
    %v828 = vadd.f32 %v816, %v818
    %829 = vadd.xlane.f32.xlu0 %v828
    %v830 = vpop.xlane.xlu0 %829
    %v831 = vrcp.pop %v821
    %v832 = vrcp.pop %v824
    %v833 = vrcp.pop %v827
    %v834 = vrcp.pop %v830
    %v835 = vmul.f32 %v804, %v831
    %v836 = vmul.f32 %v806, %v831
    %v837 = vmul.f32 %v808, %v832
    %v838 = vmul.f32 %v810, %v832
    %v839 = vmul.f32 %v812, %v833
    %v840 = vmul.f32 %v814, %v833
    %v841 = vmul.f32 %v816, %v834
    %v842 = vmul.f32 %v818, %v834
    %v843 = vld [vmem:[%s4] sm:$0xff]
    %v844 = vld [vmem:[%s4 + $0x8] sm:$0xff]
    %v845 = vld [vmem:[%s4 + $0x10] sm:$0xff]
    %v846 = vld [vmem:[%s4 + $0x18] sm:$0xff]
    %v847 = vld [vmem:[%s4 + $0x20] sm:$0xff]
    %v848 = vld [vmem:[%s4 + $0x28] sm:$0xff]
    %v849 = vld [vmem:[%s4 + $0x30] sm:$0xff]
    %v850 = vld [vmem:[%s4 + $0x38] sm:$0xff]
    %v851 = vld [vmem:[%s4 + $0x40] sm:$0xff]
    %v852 = vld [vmem:[%s4 + $0x48] sm:$0xff]
    %v853 = vld [vmem:[%s4 + $0x50] sm:$0xff]
    %v854 = vld [vmem:[%s4 + $0x58] sm:$0xff]
    %v855 = vld [vmem:[%s4 + $0x60] sm:$0xff]
    %v856 = vld [vmem:[%s4 + $0x68] sm:$0xff]
    %v857 = vld [vmem:[%s4 + $0x70] sm:$0xff]
    %v858 = vld [vmem:[%s4 + $0x78] sm:$0xff]
    %v859 = vld [vmem:[%s4 + $0x80] sm:$0xff]
    %v860 = vld [vmem:[%s4 + $0x88] sm:$0xff]
    %v861 = vld [vmem:[%s4 + $0x90] sm:$0xff]
    %v862 = vld [vmem:[%s4 + $0x98] sm:$0xff]
    %v863 = vld [vmem:[%s4 + $0xa0] sm:$0xff]
    %v864 = vld [vmem:[%s4 + $0xa8] sm:$0xff]
    %v865 = vld [vmem:[%s4 + $0xb0] sm:$0xff]
    %v866 = vld [vmem:[%s4 + $0xb8] sm:$0xff]
    %v867 = vld [vmem:[%s4 + $0xc0] sm:$0xff]
    %v868 = vld [vmem:[%s4 + $0xc8] sm:$0xff]
    %v869 = vld [vmem:[%s4 + $0xd0] sm:$0xff]
    %v870 = vld [vmem:[%s4 + $0xd8] sm:$0xff]
    %v871 = vld [vmem:[%s4 + $0xe0] sm:$0xff]
    %v872 = vld [vmem:[%s4 + $0xe8] sm:$0xff]
    %v873 = vld [vmem:[%s4 + $0xf0] sm:$0xff]
    %v874 = vld [vmem:[%s4 + $0xf8] sm:$0xff]
    %875 = vmatprep.subr.mxu0 0.0
    %876 = vmatpush1.msra.mxu0 %v858
    %877 = vmatprep.subr.mxu0 0.0
    %878 = vmatpush1.msra.mxu0 %v857
    %879 = vmatprep.subr.mxu0 0.0
    %880 = vmatpush1.msra.mxu0 %v856
    %881 = vmatprep.subr.mxu0 0.0
    %882 = vmatpush1.msra.mxu0 %v855
    %883 = vmatprep.subr.mxu0 0.0
    %884 = vmatpush1.msra.mxu0 %v854
    %885 = vmatprep.subr.mxu0 0.0
    %886 = vmatpush1.msra.mxu0 %v853
    %887 = vmatprep.subr.mxu0 0.0
    %888 = vmatpush1.msra.mxu0 %v852
    %889 = vmatprep.subr.mxu0 0.0
    %890 = vmatpush1.msra.mxu0 %v851
    %891 = vmatprep.subr.mxu0 0.0
    %892 = vmatpush1.msra.mxu0 %v850
    %893 = vmatprep.subr.mxu0 0.0
    %894 = vmatpush1.msra.mxu0 %v849
    %895 = vmatprep.subr.mxu0 0.0
    %896 = vmatpush1.msra.mxu0 %v848
    %897 = vmatprep.subr.mxu0 0.0
    %898 = vmatpush1.msra.mxu0 %v847
    %899 = vmatprep.subr.mxu0 0.0
    %900 = vmatpush1.msra.mxu0 %v846
    %901 = vmatprep.subr.mxu0 0.0
    %902 = vmatpush1.msra.mxu0 %v845
    %903 = vmatprep.subr.mxu0 0.0
    %904 = vmatpush1.msra.mxu0 %v844
    %905 = vmatprep.subr.mxu0 0.0
    %906 = vmatpush1.msra.mxu0 %v843
    %907 = vmatprep.subr.mxu0 0.0
    %908 = vmatpush2.msra.mxu0 %v874
    %909 = vmatprep.subr.mxu0 0.0
    %910 = vmatpush2.msra.mxu0 %v873
    %911 = vmatprep.subr.mxu0 0.0
    %912 = vmatpush2.msra.mxu0 %v872
    %913 = vmatprep.subr.mxu0 0.0
    %914 = vmatpush2.msra.mxu0 %v871
    %915 = vmatprep.subr.mxu0 0.0
    %916 = vmatpush2.msra.mxu0 %v870
    %917 = vmatprep.subr.mxu0 0.0
    %918 = vmatpush2.msra.mxu0 %v869
    %919 = vmatprep.subr.mxu0 0.0
    %920 = vmatpush2.msra.mxu0 %v868
    %921 = vmatprep.subr.mxu0 0.0
    %922 = vmatpush2.msra.mxu0 %v867
    %923 = vmatprep.subr.mxu0 0.0
    %924 = vmatpush2.msra.mxu0 %v866
    %925 = vmatprep.subr.mxu0 0.0
    %926 = vmatpush2.msra.mxu0 %v865
    %927 = vmatprep.subr.mxu0 0.0
    %928 = vmatpush2.msra.mxu0 %v864
    %929 = vmatprep.subr.mxu0 0.0
    %930 = vmatpush2.msra.mxu0 %v863
    %931 = vmatprep.subr.mxu0 0.0
    %932 = vmatpush2.msra.mxu0 %v862
    %933 = vmatprep.subr.mxu0 0.0
    %934 = vmatpush2.msra.mxu0 %v861
    %935 = vmatprep.subr.mxu0 0.0
    %936 = vmatpush2.msra.mxu0 %v860
    %937 = vmatprep.subr.mxu0 0.0
    %938 = vmatpush2.msra.mxu0 %v859
    %939 = vmatprep.mubr.f32.mxu0 %v836
    %940 = vmatmul.mubr.f32.gmra.mxu0 %v835
    %v941 = vpop.f32.mrf.mxu0
    %v942 = vadd.f32 0.0, %v941
    %v943 = vpop.f32.mrf.mxu0
    %944 = vmatprep.mubr.f32.mxu0 %v838
    %945 = vmatmul.mubr.f32.gmra.mxu0 %v837
    %v946 = vpop.f32.mrf.mxu0
    %v947 = vadd.f32 0.0, %v946
    %v948 = vpop.f32.mrf.mxu0
    %949 = vmatprep.mubr.f32.mxu0 %v840
    %950 = vmatmul.mubr.f32.gmra.mxu0 %v839
    %v951 = vpop.f32.mrf.mxu0
    %v952 = vadd.f32 0.0, %v951
    %v953 = vpop.f32.mrf.mxu0
    %954 = vmatprep.mubr.f32.mxu0 %v842
    %955 = vmatmul.mubr.f32.gmra.mxu0 %v841
    %v956 = vpop.f32.mrf.mxu0
    %v957 = vadd.f32 0.0, %v956
    %v958 = vpop.f32.mrf.mxu0
    %959 = vdwg.mxu0
    %v960 = vmul.f32 %v952, %v43
    %v961 = vmul.f32 %v952, %v45
    %963 = vrot.lane.b32.xlu0 %v961, 127
    %v964 = vpop.permute.xlu0 %963
    %v966 = vadd.f32 %v960, %v964
    %v967 = vmul.f32 %v48, %v966
    %v968 = vadd.f32 %v967, %v50
    %v969 = vmul.f32 %v952, %v52
    %v970 = vmul.f32 %v952, %v54
    %972 = vrot.lane.b32.xlu0 %v970, 127
    %v973 = vpop.permute.xlu0 %972
    %v975 = vadd.f32 %v969, %v973
    %v976 = vmul.f32 %v48, %v975
    %v977 = vadd.f32 %v976, %v58
    %v978 = vsub.f32 %v942, %v968
    %v979 = vand.u32 2147483647, %v978
    %981 = vrot.lane.b32.xlu0 %v977, 1
    %v982 = vpop.permute.xlu0 %981
    %v984 = vsub.f32 %v942, %v982
    %v985 = vand.u32 2147483647, %v984
    %987 = vrot.lane.b32.xlu0 %v985, 127
    %v988 = vpop.permute.xlu0 %987
    %v990 = vadd.f32 %v979, %v988
    %vm991 = vcmask 7168
    %v992 = vsel %vm991, %v990, 0.0
    %993 = vadd.xlane.f32.xlu0 %v992
    %v994 = vpop.xlane.xlu0 %993
    %v995 = vrot.slane %v994, 4
    %v996 = vadd.f32 %v994, %v995
    %v997 = vrot.slane %v996, 2
    %v998 = vadd.f32 %v996, %v997
    %v999 = vrot.slane %v998, 1
    %v1000 = vadd.f32 %v998, %v999
    %s1001 = vtos %v1000
    %s1002 = sadd.f32 %s1001, 0.0
    %s1003 = smul.f32 %s36, %s37
    %s1004 = smul.f32 %s36, %s39
    %s1005 = smul.f32 %s36, %s38
    %s1006 = smul.f32 %s36, %s40
    %v1007 = vmul.f32 %v942, 0.1
    %v1008 = vadd.f32 %v1007, 1.0
    %v1009 = vmul.f32 %v952, 0.1
    %v1010 = vadd.f32 %v1009, 1.0
    %1012 = vrot.lane.b32.xlu0 %v1008, 125
    %v1013 = vpop.permute.xlu0 %1012
    %v1015 = vmul.f32 %v1008, %v1013
    %1017 = vrot.lane.b32.xlu0 %v1007, 127
    %v1018 = vpop.permute.xlu0 %1017
    %v1020 = vmul.f32 %v1007, %v1018
    %1022 = vrot.lane.b32.xlu0 %v1020, 127
    %v1023 = vpop.permute.xlu0 %1022
    %v1025 = vsub.f32 %v1015, %v1023
    %v1026 = vrcp.pop %v1025
    %v1027 = vmul.f32 1.0, %v1026
    %1029 = vrot.lane.b32.xlu0 %v1027, 3
    %v1030 = vpop.permute.xlu0 %1029
    %v1032 = vmul.f32 %v1008, %v1030
    %v1033 = vsub.f32 0.0, %v1007
    %1034 = vrot.lane.b32.xlu0 %v1027, 1
    %v1035 = vpop.permute.xlu0 %1034
    %v1037 = vmul.f32 %v1033, %v1035
    %1038 = vrot.lane.b32.xlu0 %v1027, 2
    %v1039 = vpop.permute.xlu0 %1038
    %v1041 = vmul.f32 %v1033, %v1039
    %v1042 = vmul.f32 %v1008, %v1027
    %v1043 = vstv %s1003
    %v1044 = vmul.f32 %v1043, %v1010
    %v1045 = vstv %s1004
    %v1046 = vmul.f32 %v1045, %v1009
    %1048 = vrot.lane.b32.xlu0 %v1046, 126
    %v1049 = vpop.permute.xlu0 %1048
    %v1051 = vadd.f32 %v1044, %v1049
    %v1052 = vmul.f32 %v1043, %v1009
    %v1053 = vmul.f32 %v1045, %v1010
    %1055 = vrot.lane.b32.xlu0 %v1053, 126
    %v1056 = vpop.permute.xlu0 %1055
    %v1058 = vadd.f32 %v1052, %v1056
    %v1059 = vstv %s1005
    %v1060 = vmul.f32 %v1059, %v1010
    %v1061 = vstv %s1006
    %v1062 = vmul.f32 %v1061, %v1009
    %1064 = vrot.lane.b32.xlu0 %v1062, 126
    %v1065 = vpop.permute.xlu0 %1064
    %v1067 = vadd.f32 %v1060, %v1065
    %v1068 = vmul.f32 %v1059, %v1009
    %v1069 = vmul.f32 %v1061, %v1010
    %1071 = vrot.lane.b32.xlu0 %v1069, 126
    %v1072 = vpop.permute.xlu0 %1071
    %v1074 = vadd.f32 %v1068, %v1072
    %1076 = vrot.lane.b32.xlu0 %v1051, 3
    %v1077 = vpop.permute.xlu0 %1076
    %v1079 = vmul.f32 %v1032, %v1077
    %1081 = vrot.lane.b32.xlu0 %v1067, 1
    %v1082 = vpop.permute.xlu0 %1081
    %v1084 = vmul.f32 %v1037, %v1082
    %1086 = vrot.lane.b32.xlu0 %v1084, 2
    %v1087 = vpop.permute.xlu0 %1086
    %v1089 = vadd.f32 %v1079, %v1087
    %1091 = vrot.lane.b32.xlu0 %v1058, 2
    %v1092 = vpop.permute.xlu0 %1091
    %v1094 = vmul.f32 %v1032, %v1092
    %v1095 = vmul.f32 %v1037, %v1074
    %1097 = vrot.lane.b32.xlu0 %v1095, 2
    %v1098 = vpop.permute.xlu0 %1097
    %v1100 = vadd.f32 %v1094, %v1098
    %1101 = vrot.lane.b32.xlu0 %v1051, 2
    %v1102 = vpop.permute.xlu0 %1101
    %v1104 = vmul.f32 %v1041, %v1102
    %v1105 = vmul.f32 %v1042, %v1067
    %1107 = vrot.lane.b32.xlu0 %v1105, 2
    %v1108 = vpop.permute.xlu0 %1107
    %v1110 = vadd.f32 %v1104, %v1108
    %1111 = vrot.lane.b32.xlu0 %v1058, 1
    %v1112 = vpop.permute.xlu0 %1111
    %v1114 = vmul.f32 %v1041, %v1112
    %1116 = vrot.lane.b32.xlu0 %v1074, 127
    %v1117 = vpop.permute.xlu0 %1116
    %v1119 = vmul.f32 %v1042, %v1117
    %1121 = vrot.lane.b32.xlu0 %v1119, 2
    %v1122 = vpop.permute.xlu0 %1121
    %v1124 = vadd.f32 %v1114, %v1122
    %v1125 = vsub.f32 %v1089, 1.0
    %v1126 = vand.u32 2147483647, %v1125
    %v1127 = vand.u32 2147483647, %v1100
    %v1128 = vadd.f32 %v1126, %v1127
    %v1129 = vand.u32 2147483647, %v1110
    %1131 = vrot.lane.b32.xlu0 %v1129, 1
    %v1132 = vpop.permute.xlu0 %1131
    %v1134 = vadd.f32 %v1128, %v1132
    %v1135 = vsub.f32 %v1124, 1.0
    %v1136 = vand.u32 2147483647, %v1135
    %1138 = vrot.lane.b32.xlu0 %v1136, 1
    %v1139 = vpop.permute.xlu0 %1138
    %v1141 = vadd.f32 %v1134, %v1139
    %1143 = vrot.lane.b32.xlu0 %v1141, 123
    %v1144 = vpop.permute.xlu0 %1143
    %v1146 = vsel %vm991, %v1144, 0.0
    %1147 = vadd.xlane.f32.xlu0 %v1146
    %v1148 = vpop.xlane.xlu0 %1147
    %v1149 = vrot.slane %v1148, 4
    %v1150 = vadd.f32 %v1148, %v1149
    %v1151 = vrot.slane %v1150, 2
    %v1152 = vadd.f32 %v1150, %v1151
    %v1153 = vrot.slane %v1152, 1
    %v1154 = vadd.f32 %v1152, %v1153
    %s1155 = vtos %v1154
    %s1156 = sadd.f32 %s1155, 0.0
    %v1157 = vmul.f32 %v957, %v343
    %v1158 = vmul.f32 %v957, %v345
    %1160 = vrot.lane.b32.xlu0 %v1158, 127
    %v1161 = vpop.permute.xlu0 %1160
    %v1163 = vadd.f32 %v1157, %v1161
    %v1164 = vmul.f32 %v348, %v1163
    %v1165 = vadd.f32 %v1164, %v350
    %v1166 = vmul.f32 %v957, %v352
    %v1167 = vmul.f32 %v957, %v354
    %1169 = vrot.lane.b32.xlu0 %v1167, 127
    %v1170 = vpop.permute.xlu0 %1169
    %v1172 = vadd.f32 %v1166, %v1170
    %v1173 = vmul.f32 %v348, %v1172
    %v1174 = vadd.f32 %v1173, %v358
    %v1175 = vsub.f32 %v947, %v1165
    %v1176 = vand.u32 2147483647, %v1175
    %1178 = vrot.lane.b32.xlu0 %v1174, 1
    %v1179 = vpop.permute.xlu0 %1178
    %v1181 = vsub.f32 %v947, %v1179
    %v1182 = vand.u32 2147483647, %v1181
    %1184 = vrot.lane.b32.xlu0 %v1182, 127
    %v1185 = vpop.permute.xlu0 %1184
    %v1187 = vadd.f32 %v1176, %v1185
    %v1188 = vsel %vm991, %v1187, 0.0
    %1189 = vadd.xlane.f32.xlu0 %v1188
    %v1190 = vpop.xlane.xlu0 %1189
    %v1191 = vrot.slane %v1190, 4
    %v1192 = vadd.f32 %v1190, %v1191
    %v1193 = vrot.slane %v1192, 2
    %v1194 = vadd.f32 %v1192, %v1193
    %v1195 = vrot.slane %v1194, 1
    %v1196 = vadd.f32 %v1194, %v1195
    %s1197 = vtos %v1196
    %s1198 = sadd.f32 %s1002, %s1197
    %s1199 = smul.f32 %s336, %s337
    %s1200 = smul.f32 %s336, %s339
    %s1201 = smul.f32 %s336, %s338
    %s1202 = smul.f32 %s336, %s340
    %v1203 = vmul.f32 %v947, 0.1
    %v1204 = vadd.f32 %v1203, 1.0
    %v1205 = vmul.f32 %v957, 0.1
    %v1206 = vadd.f32 %v1205, 1.0
    %1208 = vrot.lane.b32.xlu0 %v1204, 125
    %v1209 = vpop.permute.xlu0 %1208
    %v1211 = vmul.f32 %v1204, %v1209
    %1213 = vrot.lane.b32.xlu0 %v1203, 127
    %v1214 = vpop.permute.xlu0 %1213
    %v1216 = vmul.f32 %v1203, %v1214
    %1218 = vrot.lane.b32.xlu0 %v1216, 127
    %v1219 = vpop.permute.xlu0 %1218
    %v1221 = vsub.f32 %v1211, %v1219
    %v1222 = vrcp.pop %v1221
    %v1223 = vmul.f32 1.0, %v1222
    %1225 = vrot.lane.b32.xlu0 %v1223, 3
    %v1226 = vpop.permute.xlu0 %1225
    %v1228 = vmul.f32 %v1204, %v1226
    %v1229 = vsub.f32 0.0, %v1203
    %1230 = vrot.lane.b32.xlu0 %v1223, 1
    %v1231 = vpop.permute.xlu0 %1230
    %v1233 = vmul.f32 %v1229, %v1231
    %1234 = vrot.lane.b32.xlu0 %v1223, 2
    %v1235 = vpop.permute.xlu0 %1234
    %v1237 = vmul.f32 %v1229, %v1235
    %v1238 = vmul.f32 %v1204, %v1223
    %v1239 = vstv %s1199
    %v1240 = vmul.f32 %v1239, %v1206
    %v1241 = vstv %s1200
    %v1242 = vmul.f32 %v1241, %v1205
    %1244 = vrot.lane.b32.xlu0 %v1242, 126
    %v1245 = vpop.permute.xlu0 %1244
    %v1247 = vadd.f32 %v1240, %v1245
    %v1248 = vmul.f32 %v1239, %v1205
    %v1249 = vmul.f32 %v1241, %v1206
    %1251 = vrot.lane.b32.xlu0 %v1249, 126
    %v1252 = vpop.permute.xlu0 %1251
    %v1254 = vadd.f32 %v1248, %v1252
    %v1255 = vstv %s1201
    %v1256 = vmul.f32 %v1255, %v1206
    %v1257 = vstv %s1202
    %v1258 = vmul.f32 %v1257, %v1205
    %1260 = vrot.lane.b32.xlu0 %v1258, 126
    %v1261 = vpop.permute.xlu0 %1260
    %v1263 = vadd.f32 %v1256, %v1261
    %v1264 = vmul.f32 %v1255, %v1205
    %v1265 = vmul.f32 %v1257, %v1206
    %1267 = vrot.lane.b32.xlu0 %v1265, 126
    %v1268 = vpop.permute.xlu0 %1267
    %v1270 = vadd.f32 %v1264, %v1268
    %1272 = vrot.lane.b32.xlu0 %v1247, 3
    %v1273 = vpop.permute.xlu0 %1272
    %v1275 = vmul.f32 %v1228, %v1273
    %1277 = vrot.lane.b32.xlu0 %v1263, 1
    %v1278 = vpop.permute.xlu0 %1277
    %v1280 = vmul.f32 %v1233, %v1278
    %1282 = vrot.lane.b32.xlu0 %v1280, 2
    %v1283 = vpop.permute.xlu0 %1282
    %v1285 = vadd.f32 %v1275, %v1283
    %1287 = vrot.lane.b32.xlu0 %v1254, 2
    %v1288 = vpop.permute.xlu0 %1287
    %v1290 = vmul.f32 %v1228, %v1288
    %v1291 = vmul.f32 %v1233, %v1270
    %1293 = vrot.lane.b32.xlu0 %v1291, 2
    %v1294 = vpop.permute.xlu0 %1293
    %v1296 = vadd.f32 %v1290, %v1294
    %1297 = vrot.lane.b32.xlu0 %v1247, 2
    %v1298 = vpop.permute.xlu0 %1297
    %v1300 = vmul.f32 %v1237, %v1298
    %v1301 = vmul.f32 %v1238, %v1263
    %1303 = vrot.lane.b32.xlu0 %v1301, 2
    %v1304 = vpop.permute.xlu0 %1303
    %v1306 = vadd.f32 %v1300, %v1304
    %1307 = vrot.lane.b32.xlu0 %v1254, 1
    %v1308 = vpop.permute.xlu0 %1307
    %v1310 = vmul.f32 %v1237, %v1308
    %1312 = vrot.lane.b32.xlu0 %v1270, 127
    %v1313 = vpop.permute.xlu0 %1312
    %v1315 = vmul.f32 %v1238, %v1313
    %1317 = vrot.lane.b32.xlu0 %v1315, 2
    %v1318 = vpop.permute.xlu0 %1317
    %v1320 = vadd.f32 %v1310, %v1318
    %v1321 = vsub.f32 %v1285, 1.0
    %v1322 = vand.u32 2147483647, %v1321
    %v1323 = vand.u32 2147483647, %v1296
    %v1324 = vadd.f32 %v1322, %v1323
    %v1325 = vand.u32 2147483647, %v1306
    %1327 = vrot.lane.b32.xlu0 %v1325, 1
    %v1328 = vpop.permute.xlu0 %1327
    %v1330 = vadd.f32 %v1324, %v1328
    %v1331 = vsub.f32 %v1320, 1.0
    %v1332 = vand.u32 2147483647, %v1331
    %1334 = vrot.lane.b32.xlu0 %v1332, 1
    %v1335 = vpop.permute.xlu0 %1334
    %v1337 = vadd.f32 %v1330, %v1335
    %1339 = vrot.lane.b32.xlu0 %v1337, 123
    %v1340 = vpop.permute.xlu0 %1339
    %v1342 = vsel %vm991, %v1340, 0.0
    %1343 = vadd.xlane.f32.xlu0 %v1342
    %v1344 = vpop.xlane.xlu0 %1343
    %v1345 = vrot.slane %v1344, 4
    %v1346 = vadd.f32 %v1344, %v1345
    %v1347 = vrot.slane %v1346, 2
    %v1348 = vadd.f32 %v1346, %v1347
    %v1349 = vrot.slane %v1348, 1
    %v1350 = vadd.f32 %v1348, %v1349
    %s1351 = vtos %v1350
    %s1352 = sadd.f32 %s1156, %s1351
    %v1353 = vrcp.pop 32.0
    %s1354 = vtos %v1353
    %s1355 = smul.f32 %s1198, %s1354
    %s1356 = scalar_lea.smem [#allocation4], 0
    %1357 = sst [smem:[%s1356]] %s1355
    %v1358 = vrcp.pop 64.0
    %s1359 = vtos %v1358
    %s1360 = smul.f32 %s1352, %s1359
    %s1361 = scalar_lea.smem [#allocation4], 1
    %1362 = sst [smem:[%s1361]] %s1360
    // Predicated region
    $region22: #{tpu_custom_call.1} parent=1 // pred_check
      _
    $region23: #{tpu_custom_call.1} parent=1 // pred_check_branch
      %1364 = sbr.rel (0) target = $region25
    $region24: #{tpu_custom_call.1} parent=1 // pred_region
      %s1366 = ssub.s32 16, 16
      %1367 = vsyncadd [#allocation5], %s1366
      %1370 = dma.smem_to_hbm [#allocation4], 16, %s6, [#allocation5]
    $region25: #{tpu_custom_call.1} parent=1 // pred_fallthru
      _
    // Predicated region
    $region26: #{tpu_custom_call.1} parent=1 // pred_check
      _
    $region27: #{tpu_custom_call.1} parent=1 // pred_check_branch
      %1372 = sbr.rel (0) target = $region29
    $region28: #{tpu_custom_call.1} parent=1 // pred_region
      %1373 = dma.done [#allocation5], 16
    $region29: #{tpu_custom_call.1} parent=1 // pred_fallthru
      _
    %1374 = sfence
    %1375 = vsyncpa [#allocation5], 1

</llo_original>
